<compile_context>
chip_gen: v7x
topology: tpu7x:2x2x1
jax: 0.10.0
libtpu: 0.0.40
codegen_flags: <defaults>
</compile_context>

<pallas_src>
import functools
import numpy as np
import jax
import jax.numpy as jnp
from jax import lax
from jax.experimental import pallas as pl
from jax.experimental.pallas import tpu as pltpu


# --------------------------------------------------------------------------
# helpers
# --------------------------------------------------------------------------
def _round_up(x, m):
    return ((x + m - 1) // m) * m


def _vmem_limit_bytes():
    # Derive the scoped-VMEM limit from the chip (v7x only has 64 MiB physical);
    # fall back to the v7x figure if the query is unavailable (e.g. interpret).
    try:
        cap = int(pltpu.get_tpu_info().vmem_capacity_bytes)
    except Exception:
        cap = 64 * 1024 * 1024
    return min(int(cap * 0.7), 96 * 1024 * 1024)


def _pick_row_tile(np_, dp, vmem_limit):
    # Largest row tile (up to 512: v5e/v6e hit the HBM roofline only at >=512-wide
    # tiles) whose double-buffered blocks + resident zT fit in ~75% of the limit.
    budget = int(vmem_limit * 0.75)
    for t in (512, 256, 128, 64, 32, 16, 8):
        if np_ % t == 0 and 4 * (2 * t * dp + 4 * t * np_ + 2 * dp * np_) <= budget:
            return t
    return 8


def _pick_trip_tile(np_, vmem_limit):
    # ~16 live (TT, Np) f32 temporaries in the body plus the resident
    # (double-buffered) dist matrix.
    budget = int(vmem_limit * 0.75)
    for t in (512, 256, 128, 64, 32, 16, 8):
        if (16 * t * np_ + 2 * np_ * np_) * 4 <= budget:
            return t
    return 8


# --------------------------------------------------------------------------
# Kernel 1: hyperbolic (Poincare ball, curvature c) pairwise distance matrix,
# fused with sim = exp(-dist) + (y_i == y_j).
# dist(x, y) = 2/sqrt(c) * artanh( sqrt(c) * || (-x) (+)_c y || )
# With s = <x, y>:   ||A*(-x) + B*y||^2 = A^2||x||^2 - 2AB*s + B^2||y||^2
# --------------------------------------------------------------------------
def _hyp_dist_sim_kernel(zrow_ref, zT_ref, sqcol_ref, sqrow_ref, ycol_ref, yrow_ref,
                         dist_ref, sim_ref, *, c):
    xr = zrow_ref[...]                         # (TR, Dp) row block
    u2 = sqcol_ref[...]                        # (TR, 1)  ||x_r||^2 (precomputed)
    y2 = sqrow_ref[...]                        # (1, Np)  ||y_c||^2 (precomputed)

    # <x_r, y_c>: lane-major (Dp, Np) RHS feeds vmatmul directly (no per-step
    # XLU transpose of a resident (Np, Dp) block).
    s = jnp.dot(xr, zT_ref[...], preferred_element_type=jnp.float32)   # (TR, Np)

    A = 1.0 - 2.0 * c * s + c * y2
    B = 1.0 - c * u2
    num2 = A * A * u2 - 2.0 * A * B * s + B * B * y2
    denom = jnp.maximum(1.0 - 2.0 * c * s + (c * c) * u2 * y2, 1e-15)  # hyptorch clamp
    norm = jnp.sqrt(jnp.maximum(num2, 0.0)) * pl.reciprocal(denom, approx=True)

    sqrt_c = c ** 0.5
    t = jnp.clip(sqrt_c * norm, -1.0 + 1e-5, 1.0 - 1e-5)
    # artanh with an exact division: (1 - t) can be ~1e-5 near the ball boundary,
    # where an approx-reciprocal error would be amplified by the log.
    atanh = 0.5 * jnp.log((1.0 + t) / (1.0 - t))
    dist = (2.0 / sqrt_c) * atanh
    dist_ref[...] = dist

    same = (ycol_ref[...] == yrow_ref[...]).astype(jnp.float32)
    sim_ref[...] = jnp.exp(-dist) + same


def hyperbolic_dist_and_sim(z, y, c, vmem_limit):
    np_, dp = z.shape
    tr = _pick_row_tile(np_, dp, vmem_limit)
    zT = jnp.transpose(z)                         # (Dp, Np), transposed once in XLA
    sq = jnp.sum(z * z, axis=1)
    sqcol = sq[:, None]
    sqrow = sq[None, :]
    yi = y.astype(jnp.int32)
    ycol = yi[:, None]
    yrow = yi[None, :]

    dist, sim = pl.pallas_call(
        functools.partial(_hyp_dist_sim_kernel, c=float(c)),
        out_shape=(jax.ShapeDtypeStruct((np_, np_), jnp.float32),
                   jax.ShapeDtypeStruct((np_, np_), jnp.float32)),
        grid_spec=pltpu.PrefetchScalarGridSpec(
            num_scalar_prefetch=0,
            grid=(np_ // tr,),
            in_specs=[pl.BlockSpec((tr, dp), lambda i: (i, 0)),
                      pl.BlockSpec((dp, np_), lambda i: (0, 0)),
                      pl.BlockSpec((tr, 1), lambda i: (i, 0)),
                      pl.BlockSpec((1, np_), lambda i: (0, 0)),
                      pl.BlockSpec((tr, 1), lambda i: (i, 0)),
                      pl.BlockSpec((1, np_), lambda i: (0, 0))],
            out_specs=[pl.BlockSpec((tr, np_), lambda i: (i, 0)),
                       pl.BlockSpec((tr, np_), lambda i: (i, 0))],
        ),
        compiler_params=pltpu.CompilerParams(
            dimension_semantics=("parallel",),
            vmem_limit_bytes=vmem_limit),
    )(z, zT, sqcol, sqrow, ycol, yrow)
    return dist, sim


# --------------------------------------------------------------------------
# Kernel 2: gHHC triplet loss with in-kernel row gather and in-kernel gumbel.
# --------------------------------------------------------------------------
def _uniform01(cnt, seed):
    # Counter-based hash RNG in pure int32 vector ops (xor / shift / wrapping
    # multiply) -> lowers on Mosaic and in interpret mode alike.
    x = cnt + seed * jnp.int32(374761393)
    x = (x ^ (x >> 15)) * jnp.int32(-1640531535)
    x = (x ^ (x >> 13)) * jnp.int32(668265263)
    x = x ^ (x >> 16)
    return (x & jnp.int32(0x007FFFFF)).astype(jnp.float32) * (1.0 / 8388608.0)


def _gumbel(cnt, seed):
    u = _uniform01(cnt, seed)
    return -jnp.log(-jnp.log(u + 1e-12) + 1e-12)


def _ghhc_kernel(seed_ref, ii_ref, jj_ref, kk_ref, dist_ref, o_ref, *,
                 tau, mrg, n_real, t_real, trip_tile, n_pad):
    f32 = jnp.float32
    seed = seed_ref[0]
    dist = dist_ref[...]                                    # (Np, Np) VMEM-resident
    shape = (trip_tile, n_pad)
    col = lax.broadcasted_iota(jnp.int32, shape, 1)
    row = lax.broadcasted_iota(jnp.int32, shape, 0) + pl.program_id(0) * trip_tile

    # --- in-kernel triplet row gather: one_hot(idx) @ dist on the MXU (no HBM
    #     materialization of the (T,N) gathered rows).
    di = jnp.dot((col == ii_ref[...]).astype(f32), dist, preferred_element_type=f32)
    dj = jnp.dot((col == jj_ref[...]).astype(f32), dist, preferred_element_type=f32)
    dk = jnp.dot((col == kk_ref[...]).astype(f32), dist, preferred_element_type=f32)

    # --- gumbel noise from two disjoint counter streams (no pltpu PRNG)
    base = row * jnp.int32(2 * n_pad) + col
    g1 = _gumbel(base, seed)
    g2 = _gumbel(base + jnp.int32(n_pad), seed)

    inv_tau = 1.0 / tau
    colmask = col < n_real            # padded columns must never win the argmax

    # LCA(i, j): F.gumbel_softmax(hard=True) forward value == one_hot(argmax(logit+g))
    max_ij = jnp.maximum(di, dj)
    logit1 = jnp.where(colmask, -max_ij * inv_tau + g1, -1e30)
    m1 = jnp.max(logit1, axis=1, keepdims=True)
    idx1 = jnp.min(jnp.where(logit1 >= m1, col, n_pad), axis=1, keepdims=True)
    p1 = (col == idx1).astype(f32)

    # LCA(i, j, k)
    max_ijk = jnp.maximum(dk, max_ij)
    logit2 = jnp.where(colmask, -max_ijk * inv_tau + g2, -1e30)
    m2 = jnp.max(logit2, axis=1, keepdims=True)
    idx2 = jnp.min(jnp.where(logit2 >= m2, col, n_pad), axis=1, keepdims=True)
    p2 = (col == idx2).astype(f32)

    # Only the differences d_*_lca_ij - d_*_lca_ijk are needed; run the three
    # weighted lane-sums on the MXU (ones-block dot) to keep the XLU free for
    # the four max/argmin reductions above.
    pdiff = p1 - p2
    ones_blk = jnp.ones((n_pad, 128), f32)
    d_i = jnp.dot(di * pdiff, ones_blk, preferred_element_type=f32)[:, :1]
    d_j = jnp.dot(dj * pdiff, ones_blk, preferred_element_type=f32)[:, :1]
    d_k = jnp.dot(dk * pdiff, ones_blk, preferred_element_type=f32)[:, :1]

    hc = (jnp.maximum(d_i + mrg, 0.0)
          + jnp.maximum(d_j + mrg, 0.0)
          + jnp.maximum(-d_k + mrg, 0.0))
    gate = (idx1 != idx2).astype(f32)
    valid = (row[:, :1] < t_real).astype(f32)        # padding mask over triplets

    tile_sum = jnp.sum(hc * gate * valid)
    o_ref[...] = jnp.zeros((8, 128), f32) + tile_sum   # lane-dense partial sum


def ghhc_partial_sums(ii, jj, kk, dist, seed, *, tau, mrg, n_real, t_real,
                      trip_tile, vmem_limit):
    t_pad = ii.shape[0]
    n_pad = dist.shape[0]
    grid_len = t_pad // trip_tile
    idx_spec = pl.BlockSpec((trip_tile, 1), lambda t, s: (t, 0))

    out = pl.pallas_call(
        functools.partial(_ghhc_kernel, tau=float(tau), mrg=float(mrg),
                          n_real=int(n_real), t_real=int(t_real),
                          trip_tile=trip_tile, n_pad=n_pad),
        out_shape=jax.ShapeDtypeStruct((8 * grid_len, 128), jnp.float32),
        grid_spec=pltpu.PrefetchScalarGridSpec(
            num_scalar_prefetch=1,
            grid=(grid_len,),
            in_specs=[idx_spec, idx_spec, idx_spec,
                      # dist stays resident (constant block index) so the triplet
                      # gather never re-touches HBM.
                      # TODO(synk): for n_pad > ~1.5k the resident dist no longer
                      # fits v7x VMEM; stream dist row-blocks instead.
                      pl.BlockSpec((n_pad, n_pad), lambda t, s: (0, 0))],
            out_specs=pl.BlockSpec((8, 128), lambda t, s: (t, 0)),
        ),
        compiler_params=pltpu.CompilerParams(
            dimension_semantics=("parallel",),
            vmem_limit_bytes=vmem_limit),
    )(seed, ii, jj, kk, dist)
    return out[::8, 0]                                   # one partial sum per tile


# --------------------------------------------------------------------------
# Module wrapper (no learnable parameters: ToPoincare has train_c=False and is
# never applied in the reference forward).
# --------------------------------------------------------------------------
class HIERLossPallas:
    def __init__(self, sz_embed, mrg=0.1, tau=0.1, hyp_c=0.1, clip_r=2.3):
        self.sz_embed = sz_embed
        self.tau = tau
        self.hyp_c = hyp_c
        self.mrg = mrg
        self.clip_r = clip_r  # unused in forward (ToPoincare never applied there)
        assert hyp_c > 0  # TODO(synk): hyp_c<=0 cosine-distance branch not implemented

    def get_reciprocal_triplets(self, topk_idx, n, t_per_anchor=100, seed=0):
        # Host-side reciprocal-NN sampling mirroring the torch/numpy reference;
        # only the (n, topk) top-k index matrix was copied off-device.
        rng = np.random.default_rng(seed)
        nn_mat = np.zeros((n, n), dtype=np.float32)
        np.put_along_axis(nn_mat, topk_idx, 1.0, axis=1)
        s = (nn_mat + nn_mat.T) / 2.0
        np.fill_diagonal(s, -1.0)
        anchor_idx, positive_idx, negative_idx = [], [], []
        for i in range(n):
            pos = np.nonzero(s[i] == 1)[0]
            if len(pos) <= 1:
                continue
            neg = np.nonzero(s[i] < 1)[0]
            positive_idx.append(rng.choice(pos, t_per_anchor, replace=True))
            negative_idx.append(rng.choice(neg, t_per_anchor, replace=True))
            anchor_idx.append(np.full(t_per_anchor, i, dtype=np.int64))
        if not anchor_idx:
            raise RuntimeError("no valid anchors found for triplet sampling")
        return (np.concatenate(anchor_idx), np.concatenate(positive_idx),
                np.concatenate(negative_idx))

    def forward(self, z_s, y, topk=30, key=None):
        if key is None:
            key = jax.random.PRNGKey(0)
        n, d = z_s.shape
        vmem_limit = _vmem_limit_bytes()

        # --- pad to lane-dense shapes (multiples of 128). Zero-padding D keeps
        #     norms / inner products exact; padded rows/cols are masked below.
        n_pad = _round_up(n, 128)
        d_pad = _round_up(d, 128)
        z = jnp.pad(z_s.astype(jnp.float32), ((0, n_pad - n), (0, d_pad - d)))
        y_pad = jnp.pad(jnp.asarray(y).astype(jnp.int32), (0, n_pad - n),
                        constant_values=-1)

        # --- kernel 1: pairwise hyperbolic distances + fused sim / label boost
        dist, sim = hyperbolic_dist_and_sim(z, y_pad, self.hyp_c, vmem_limit)

        # --- top-k on device; only the (n, topk) index matrix crosses to host
        topk_eff = min(topk, n)
        _, topk_idx = lax.top_k(sim[:n, :n], topk_eff)
        topk_idx_np = np.asarray(jax.device_get(topk_idx))

        i_idx, j_idx, k_idx = self.get_reciprocal_triplets(
            topk_idx_np, n, t_per_anchor=50, seed=0)
        t_real = int(i_idx.shape[0])

        # --- pad triplet count to the tile and to an even grid (v7x megacore)
        trip_tile = _pick_trip_tile(n_pad, vmem_limit)
        grid_len = -(-t_real // trip_tile)
        if grid_len % 2 == 1:
            grid_len += 1
        t_pad = grid_len * trip_tile
        pad = t_pad - t_real
        to_dev = lambda a: jnp.asarray(
            np.pad(a.astype(np.int32), (0, pad)).reshape(t_pad, 1))
        ii, jj, kk = to_dev(i_idx), to_dev(j_idx), to_dev(k_idx)

        # gumbel seed stays a device scalar (no int() host sync)
        seed = jax.random.randint(key, (1,), 0, 2 ** 31 - 1, dtype=jnp.int32)

        # --- kernel 2: gHHC loss partial sums (in-kernel gather + gumbel)
        partials = ghhc_partial_sums(ii, jj, kk, dist, seed,
                                     tau=self.tau, mrg=self.mrg,
                                     n_real=n, t_real=t_real,
                                     trip_tile=trip_tile, vmem_limit=vmem_limit)
        return jnp.sum(partials) / t_real                 # hc_loss.mean()

    __call__ = forward


if __name__ == "__main__":
    key = jax.random.PRNGKey(0)
    bs, d, n_classes = 32, 32, 4
    k1, k2, k3 = jax.random.split(key, 3)

    # Embeddings inside the Poincare ball of curvature c=0.1 (radius ~3.16).
    z = jax.random.normal(k1, (bs, d), dtype=jnp.float32)
    z = z / (jnp.linalg.norm(z, axis=1, keepdims=True) + 1e-6) * 0.5
    y = jax.random.randint(k2, (bs,), 0, n_classes)

    loss_mod = HIERLossPallas(sz_embed=d, mrg=0.1, tau=0.1, hyp_c=0.1, clip_r=2.3)
    loss = loss_mod(z, y, topk=8, key=k3)
    jax.block_until_ready(loss)
    assert loss.shape == () and bool(jnp.isfinite(loss))
    print("KERNEL_OK")
</pallas_src>

<mosaic_0001>
module attributes {stable_mosaic.version = 11 : i64} {
  func.func @_hyp_dist_sim_kernel(%arg0: i32, %arg1: memref<128x128xf32, #tpu.memory_space<vmem>>, %arg2: memref<128x128xf32, #tpu.memory_space<vmem>>, %arg3: memref<128x1xf32, #tpu.memory_space<vmem>>, %arg4: memref<1x128xf32, #tpu.memory_space<vmem>>, %arg5: memref<128x1xi32, #tpu.memory_space<vmem>>, %arg6: memref<1x128xi32, #tpu.memory_space<vmem>>, %arg7: memref<128x128xf32, #tpu.memory_space<vmem>>, %arg8: memref<128x128xf32, #tpu.memory_space<vmem>>) attributes {dimension_semantics = [#tpu.dimension_semantics<parallel>], iteration_bounds = array<i64: 1>, scalar_prefetch = 0 : i64, scratch_operands = 0 : i64, tpu.core_type = #tpu.core_type<tc>, window_params = [{transform_indices = @transform_0, window_bounds = array<i64: 128, 128>}, {pipeline_mode = #tpu.pipeline_mode<synchronous>, transform_indices = @transform_1, window_bounds = array<i64: 128, 128>}, {transform_indices = @transform_2, window_bounds = array<i64: 128, 1>}, {pipeline_mode = #tpu.pipeline_mode<synchronous>, transform_indices = @transform_3, window_bounds = array<i64: 1, 128>}, {transform_indices = @transform_4, window_bounds = array<i64: 128, 1>}, {pipeline_mode = #tpu.pipeline_mode<synchronous>, transform_indices = @transform_5, window_bounds = array<i64: 1, 128>}, {transform_indices = @transform_6, window_bounds = array<i64: 128, 128>}, {transform_indices = @transform_7, window_bounds = array<i64: 128, 128>}]} {
    %c0 = arith.constant 0 : index
    %c0_0 = arith.constant 0 : index
    %0 = vector.load %arg1[%c0, %c0_0] : memref<128x128xf32, #tpu.memory_space<vmem>>, vector<128x128xf32>
    %c0_1 = arith.constant 0 : index
    %c0_2 = arith.constant 0 : index
    %1 = vector.load %arg3[%c0_1, %c0_2] : memref<128x1xf32, #tpu.memory_space<vmem>>, vector<128x1xf32>
    %c0_3 = arith.constant 0 : index
    %c0_4 = arith.constant 0 : index
    %2 = vector.load %arg4[%c0_3, %c0_4] : memref<1x128xf32, #tpu.memory_space<vmem>>, vector<1x128xf32>
    %c0_5 = arith.constant 0 : index
    %c0_6 = arith.constant 0 : index
    %3 = vector.load %arg2[%c0_5, %c0_6] : memref<128x128xf32, #tpu.memory_space<vmem>>, vector<128x128xf32>
    %cst = arith.constant dense<0.000000e+00> : vector<128x128xf32>
    %4 = tpu.matmul %0, %3, %cst {dimension_numbers = #tpu.dot_dimension_numbers<[1], [0], [0], [1], [0, 0, 1, 1], [], []>} : vector<128x128xf32>, vector<128x128xf32>, vector<128x128xf32> -> vector<128x128xf32>
    %cst_7 = arith.constant 2.000000e-01 : f32
    %5 = vector.broadcast %cst_7 : f32 to vector<128x128xf32>
    %6 = arith.mulf %5, %4 : vector<128x128xf32>
    %cst_8 = arith.constant 1.000000e+00 : f32
    %7 = vector.broadcast %cst_8 : f32 to vector<128x128xf32>
    %8 = arith.subf %7, %6 : vector<128x128xf32>
    %cst_9 = arith.constant 1.000000e-01 : f32
    %9 = vector.broadcast %cst_9 : f32 to vector<1x128xf32>
    %10 = arith.mulf %9, %2 : vector<1x128xf32>
    %11 = vector.broadcast %10 : vector<1x128xf32> to vector<128x128xf32>
    %12 = arith.addf %8, %11 : vector<128x128xf32>
    %cst_10 = arith.constant 1.000000e-01 : f32
    %13 = vector.broadcast %cst_10 : f32 to vector<128x1xf32>
    %14 = arith.mulf %13, %1 : vector<128x1xf32>
    %cst_11 = arith.constant 1.000000e+00 : f32
    %15 = vector.broadcast %cst_11 : f32 to vector<128x1xf32>
    %16 = arith.subf %15, %14 : vector<128x1xf32>
    %17 = arith.mulf %12, %12 : vector<128x128xf32>
    %18 = vector.broadcast %1 : vector<128x1xf32> to vector<128x128xf32>
    %19 = arith.mulf %17, %18 : vector<128x128xf32>
    %cst_12 = arith.constant 2.000000e+00 : f32
    %20 = vector.broadcast %cst_12 : f32 to vector<128x128xf32>
    %21 = arith.mulf %20, %12 : vector<128x128xf32>
    %22 = vector.broadcast %16 : vector<128x1xf32> to vector<128x128xf32>
    %23 = arith.mulf %21, %22 : vector<128x128xf32>
    %24 = arith.mulf %23, %4 : vector<128x128xf32>
    %25 = arith.subf %19, %24 : vector<128x128xf32>
    %26 = arith.mulf %16, %16 : vector<128x1xf32>
    %27 = vector.broadcast %26 : vector<128x1xf32> to vector<128x128xf32>
    %28 = vector.broadcast %2 : vector<1x128xf32> to vector<128x128xf32>
    %29 = arith.mulf %27, %28 : vector<128x128xf32>
    %30 = arith.addf %25, %29 : vector<128x128xf32>
    %cst_13 = arith.constant 2.000000e-01 : f32
    %31 = vector.broadcast %cst_13 : f32 to vector<128x128xf32>
    %32 = arith.mulf %31, %4 : vector<128x128xf32>
    %cst_14 = arith.constant 1.000000e+00 : f32
    %33 = vector.broadcast %cst_14 : f32 to vector<128x128xf32>
    %34 = arith.subf %33, %32 : vector<128x128xf32>
    %cst_15 = arith.constant 0.00999999977 : f32
    %35 = vector.broadcast %cst_15 : f32 to vector<128x1xf32>
    %36 = arith.mulf %35, %1 : vector<128x1xf32>
    %37 = vector.broadcast %36 : vector<128x1xf32> to vector<128x128xf32>
    %38 = vector.broadcast %2 : vector<1x128xf32> to vector<128x128xf32>
    %39 = arith.mulf %37, %38 : vector<128x128xf32>
    %40 = arith.addf %34, %39 : vector<128x128xf32>
    %cst_16 = arith.constant 1.000000e-15 : f32
    %41 = vector.broadcast %cst_16 : f32 to vector<128x128xf32>
    %42 = arith.maximumf %40, %41 : vector<128x128xf32>
    %cst_17 = arith.constant 0.000000e+00 : f32
    %43 = vector.broadcast %cst_17 : f32 to vector<128x128xf32>
    %44 = arith.maximumf %30, %43 : vector<128x128xf32>
    %45 = math.sqrt %44 : vector<128x128xf32>
    %46 = tpu.reciprocal %42 {approx = true} : vector<128x128xf32> -> vector<128x128xf32>
    %47 = arith.mulf %45, %46 : vector<128x128xf32>
    %cst_18 = arith.constant 0.316227764 : f32
    %48 = vector.broadcast %cst_18 : f32 to vector<128x128xf32>
    %49 = arith.mulf %48, %47 : vector<128x128xf32>
    %cst_19 = arith.constant -0.999989986 : f32
    %cst_20 = arith.constant 0.999989986 : f32
    %50 = vector.broadcast %cst_19 : f32 to vector<128x128xf32>
    %51 = arith.maximumf %50, %49 : vector<128x128xf32>
    %52 = vector.broadcast %cst_20 : f32 to vector<128x128xf32>
    %53 = arith.minimumf %52, %51 : vector<128x128xf32>
    %cst_21 = arith.constant 1.000000e+00 : f32
    %54 = vector.broadcast %cst_21 : f32 to vector<128x128xf32>
    %55 = arith.addf %54, %53 : vector<128x128xf32>
    %cst_22 = arith.constant 1.000000e+00 : f32
    %56 = vector.broadcast %cst_22 : f32 to vector<128x128xf32>
    %57 = arith.subf %56, %53 : vector<128x128xf32>
    %58 = arith.divf %55, %57 : vector<128x128xf32>
    %59 = math.log %58 : vector<128x128xf32>
    %cst_23 = arith.constant 5.000000e-01 : f32
    %60 = vector.broadcast %cst_23 : f32 to vector<128x128xf32>
    %61 = arith.mulf %60, %59 : vector<128x128xf32>
    %cst_24 = arith.constant 6.32455539 : f32
    %62 = vector.broadcast %cst_24 : f32 to vector<128x128xf32>
    %63 = arith.mulf %62, %61 : vector<128x128xf32>
    %c0_25 = arith.constant 0 : index
    %c0_26 = arith.constant 0 : index
    %64 = vector.load %arg7[%c0_25, %c0_26] : memref<128x128xf32, #tpu.memory_space<vmem>>, vector<128x128xf32>
    tpu.vector_store %arg7[%c0_25, %c0_26], %63 {strides = array<i32>} : memref<128x128xf32, #tpu.memory_space<vmem>>, vector<128x128xf32>,
    %c0_27 = arith.constant 0 : index
    %c0_28 = arith.constant 0 : index
    %65 = vector.load %arg5[%c0_27, %c0_28] : memref<128x1xi32, #tpu.memory_space<vmem>>, vector<128x1xi32>
    %c0_29 = arith.constant 0 : index
    %c0_30 = arith.constant 0 : index
    %66 = vector.load %arg6[%c0_29, %c0_30] : memref<1x128xi32, #tpu.memory_space<vmem>>, vector<1x128xi32>
    %67 = vector.broadcast %65 : vector<128x1xi32> to vector<128x128xi32>
    %68 = vector.broadcast %66 : vector<1x128xi32> to vector<128x128xi32>
    %69 = arith.cmpi eq, %67, %68 : vector<128x128xi32>
    %70 = arith.extui %69 : vector<128x128xi1> to vector<128x128xi32>
    %71 = arith.sitofp %70 : vector<128x128xi32> to vector<128x128xf32>
    %cst_31 = arith.constant 0.000000e+00 : f32
    %72 = vector.broadcast %cst_31 : f32 to vector<128x128xf32>
    %73 = arith.subf %72, %63 : vector<128x128xf32>
    %74 = math.exp %73 : vector<128x128xf32>
    %75 = arith.addf %74, %71 : vector<128x128xf32>
    %c0_32 = arith.constant 0 : index
    %c0_33 = arith.constant 0 : index
    %76 = vector.load %arg8[%c0_32, %c0_33] : memref<128x128xf32, #tpu.memory_space<vmem>>, vector<128x128xf32>
    tpu.vector_store %arg8[%c0_32, %c0_33], %75 {strides = array<i32>} : memref<128x128xf32, #tpu.memory_space<vmem>>, vector<128x128xf32>,
    return
  }
  func.func @transform_0(%arg0: i32) -> (i32, i32) {
    %c0_i32 = arith.constant 0 : i32
    %c0_i32_0 = arith.constant 0 : i32
    return %arg0, %c0_i32 : i32, i32
  }
  func.func @transform_1(%arg0: i32) -> (i32, i32) {
    %c0_i32 = arith.constant 0 : i32
    %c0_i32_0 = arith.constant 0 : i32
    %c0_i32_1 = arith.constant 0 : i32
    return %c0_i32, %c0_i32_0 : i32, i32
  }
  func.func @transform_2(%arg0: i32) -> (i32, i32) {
    %c0_i32 = arith.constant 0 : i32
    %c0_i32_0 = arith.constant 0 : i32
    return %arg0, %c0_i32 : i32, i32
  }
  func.func @transform_3(%arg0: i32) -> (i32, i32) {
    %c0_i32 = arith.constant 0 : i32
    %c0_i32_0 = arith.constant 0 : i32
    %c0_i32_1 = arith.constant 0 : i32
    return %c0_i32, %c0_i32_0 : i32, i32
  }
  func.func @transform_4(%arg0: i32) -> (i32, i32) {
    %c0_i32 = arith.constant 0 : i32
    %c0_i32_0 = arith.constant 0 : i32
    return %arg0, %c0_i32 : i32, i32
  }
  func.func @transform_5(%arg0: i32) -> (i32, i32) {
    %c0_i32 = arith.constant 0 : i32
    %c0_i32_0 = arith.constant 0 : i32
    %c0_i32_1 = arith.constant 0 : i32
    return %c0_i32, %c0_i32_0 : i32, i32
  }
  func.func @transform_6(%arg0: i32) -> (i32, i32) {
    %c0_i32 = arith.constant 0 : i32
    %c0_i32_0 = arith.constant 0 : i32
    return %arg0, %c0_i32 : i32, i32
  }
  func.func @transform_7(%arg0: i32) -> (i32, i32) {
    %c0_i32 = arith.constant 0 : i32
    %c0_i32_0 = arith.constant 0 : i32
    return %arg0, %c0_i32 : i32, i32
  }
}

</mosaic_0001>

<llo_original>
// kernel: tpu_custom_call.1
$region0: #{tpu_custom_call.1}
  #allocation0 [shape = 'u32[]', space=smem, size = 0x4, offset = 0x4, fixed_abs, tag = 'smem constant byte address 0x4 - core index']
  #allocation1 [shape = 'u32[144,128]{1,0:T(1,128)}', space=vmem, size = 0x12000, scoped, tag = 'internal scratch']
  %s0 = inlined_call_operand.vmem [shape: f32[128,128], index: 0, kind: input, shape index: {}]
  %s1 = inlined_call_operand.vmem [shape: f32[128,128], index: 1, kind: input, shape index: {}]
  %s2 = inlined_call_operand.vmem [shape: f32[128,1], index: 2, kind: input, shape index: {}]
  %s3 = inlined_call_operand.vmem [shape: f32[1,128], index: 3, kind: input, shape index: {}]
  %s4 = inlined_call_operand.vmem [shape: s32[128,1], index: 4, kind: input, shape index: {}]
  %s5 = inlined_call_operand.vmem [shape: s32[1,128], index: 5, kind: input, shape index: {}]
  %s6 = inlined_call_operand.hbm [shape: f32[128,128], index: 6, kind: output, shape index: {0}]
  %s7 = inlined_call_operand.hbm [shape: f32[128,128], index: 7, kind: output, shape index: {1}]
  %8 = xla_tuple %s6, %s7
  %s9 = sld [smem:[#allocation0]]
  $region42: #{tpu_custom_call.1} parent=0
    _
  %s11 = ssub.s32 1, %s9
  %s12 = scalar_select 0, %s11, %s9
  $region1: #{tpu_custom_call.1} parent=0
    #allocation2 [shape = 'u8[65536]{0}', space=vmem, size = 0x10000, scoped, tag = 'output window, operand 0, single buffered']
    #allocation3 [shape = 's32[1]{0}', space=sflag, size = 0x4, scoped, tag = 'scoped memory for tpu_custom_call.1']
    #allocation4 [shape = 'u8[65536]{0}', space=vmem, size = 0x10000, scoped, tag = 'output window, operand 1, single buffered']
    #allocation5 [shape = 's32[1]{0}', space=sflag, size = 0x4, scoped, tag = 'scoped memory for tpu_custom_call.1']
    %13 = vsyncpa [#allocation3], 0
    %14 = vsyncpa [#allocation5], 0
    // Predicated region
    $region2: #{tpu_custom_call.1} parent=1 // pred_check
      _
    $region3: #{tpu_custom_call.1} parent=1 // pred_check_branch
      %16 = sbr.rel (0) target = $region5
    $region4: #{tpu_custom_call.1} parent=1 // pred_region
      _
    $region5: #{tpu_custom_call.1} parent=1 // pred_fallthru
      _
    // Predicated region
    $region6: #{tpu_custom_call.1} parent=1 // pred_check
      _
    $region7: #{tpu_custom_call.1} parent=1 // pred_check_branch
      %18 = sbr.rel (0) target = $region9
    $region8: #{tpu_custom_call.1} parent=1 // pred_region
      _
    $region9: #{tpu_custom_call.1} parent=1 // pred_fallthru
      _
    // Predicated region
    $region10: #{tpu_custom_call.1} parent=1 // pred_check
      _
    $region11: #{tpu_custom_call.1} parent=1 // pred_check_branch
      %20 = sbr.rel (0) target = $region13
    $region12: #{tpu_custom_call.1} parent=1 // pred_region
      _
    $region13: #{tpu_custom_call.1} parent=1 // pred_fallthru
      _
    // Predicated region
    $region14: #{tpu_custom_call.1} parent=1 // pred_check
      _
    $region15: #{tpu_custom_call.1} parent=1 // pred_check_branch
      %22 = sbr.rel (0) target = $region17
    $region16: #{tpu_custom_call.1} parent=1 // pred_region
      _
    $region17: #{tpu_custom_call.1} parent=1 // pred_fallthru
      _
    // Predicated region
    $region18: #{tpu_custom_call.1} parent=1 // pred_check
      _
    $region19: #{tpu_custom_call.1} parent=1 // pred_check_branch
      %24 = sbr.rel (0) target = $region21
    $region20: #{tpu_custom_call.1} parent=1 // pred_region
      _
    $region21: #{tpu_custom_call.1} parent=1 // pred_fallthru
      _
    // Predicated region
    $region22: #{tpu_custom_call.1} parent=1 // pred_check
      _
    $region23: #{tpu_custom_call.1} parent=1 // pred_check_branch
      %26 = sbr.rel (0) target = $region25
    $region24: #{tpu_custom_call.1} parent=1 // pred_region
      _
    $region25: #{tpu_custom_call.1} parent=1 // pred_fallthru
      _
    %v27 = vld [vmem:[%s0] sm:$0xff]
    %v28 = vld [vmem:[%s0 + $0x8] sm:$0xff]
    %v29 = vld [vmem:[%s0 + $0x10] sm:$0xff]
    %v30 = vld [vmem:[%s0 + $0x18] sm:$0xff]
    %v31 = vld [vmem:[%s0 + $0x20] sm:$0xff]
    %v32 = vld [vmem:[%s0 + $0x28] sm:$0xff]
    %v33 = vld [vmem:[%s0 + $0x30] sm:$0xff]
    %v34 = vld [vmem:[%s0 + $0x38] sm:$0xff]
    %v35 = vld [vmem:[%s0 + $0x40] sm:$0xff]
    %v36 = vld [vmem:[%s0 + $0x48] sm:$0xff]
    %v37 = vld [vmem:[%s0 + $0x50] sm:$0xff]
    %v38 = vld [vmem:[%s0 + $0x58] sm:$0xff]
    %v39 = vld [vmem:[%s0 + $0x60] sm:$0xff]
    %v40 = vld [vmem:[%s0 + $0x68] sm:$0xff]
    %v41 = vld [vmem:[%s0 + $0x70] sm:$0xff]
    %v42 = vld [vmem:[%s0 + $0x78] sm:$0xff]
    %v43 = vld [vmem:[%s2] sm:$0xff]
    %v44 = vld [vmem:[%s2 + $0x8] sm:$0xff]
    %v45 = vld [vmem:[%s2 + $0x10] sm:$0xff]
    %v46 = vld [vmem:[%s2 + $0x18] sm:$0xff]
    %v47 = vld [vmem:[%s2 + $0x20] sm:$0xff]
    %v48 = vld [vmem:[%s2 + $0x28] sm:$0xff]
    %v49 = vld [vmem:[%s2 + $0x30] sm:$0xff]
    %v50 = vld [vmem:[%s2 + $0x38] sm:$0xff]
    %v51 = vld [vmem:[%s2 + $0x40] sm:$0xff]
    %v52 = vld [vmem:[%s2 + $0x48] sm:$0xff]
    %v53 = vld [vmem:[%s2 + $0x50] sm:$0xff]
    %v54 = vld [vmem:[%s2 + $0x58] sm:$0xff]
    %v55 = vld [vmem:[%s2 + $0x60] sm:$0xff]
    %v56 = vld [vmem:[%s2 + $0x68] sm:$0xff]
    %v57 = vld [vmem:[%s2 + $0x70] sm:$0xff]
    %v58 = vld [vmem:[%s2 + $0x78] sm:$0xff]
    %v59 = vld [vmem:[%s3] sm:$0x1]
    %v60 = vld [vmem:[%s1] sm:$0xff]
    %v61 = vld [vmem:[%s1 + $0x8] sm:$0xff]
    %v62 = vld [vmem:[%s1 + $0x10] sm:$0xff]
    %v63 = vld [vmem:[%s1 + $0x18] sm:$0xff]
    %v64 = vld [vmem:[%s1 + $0x20] sm:$0xff]
    %v65 = vld [vmem:[%s1 + $0x28] sm:$0xff]
    %v66 = vld [vmem:[%s1 + $0x30] sm:$0xff]
    %v67 = vld [vmem:[%s1 + $0x38] sm:$0xff]
    %v68 = vld [vmem:[%s1 + $0x40] sm:$0xff]
    %v69 = vld [vmem:[%s1 + $0x48] sm:$0xff]
    %v70 = vld [vmem:[%s1 + $0x50] sm:$0xff]
    %v71 = vld [vmem:[%s1 + $0x58] sm:$0xff]
    %v72 = vld [vmem:[%s1 + $0x60] sm:$0xff]
    %v73 = vld [vmem:[%s1 + $0x68] sm:$0xff]
    %v74 = vld [vmem:[%s1 + $0x70] sm:$0xff]
    %v75 = vld [vmem:[%s1 + $0x78] sm:$0xff]
    %76 = vmatprep.subr.mxu0 0.0
    %77 = vmatpush1.msra.mxu0 %v60
    %78 = vmatprep.subr.mxu0 0.0
    %79 = vmatpush1.msra.mxu0 %v61
    %80 = vmatprep.subr.mxu0 0.0
    %81 = vmatpush1.msra.mxu0 %v62
    %82 = vmatprep.subr.mxu0 0.0
    %83 = vmatpush1.msra.mxu0 %v63
    %84 = vmatprep.subr.mxu0 0.0
    %85 = vmatpush1.msra.mxu0 %v64
    %86 = vmatprep.subr.mxu0 0.0
    %87 = vmatpush1.msra.mxu0 %v65
    %88 = vmatprep.subr.mxu0 0.0
    %89 = vmatpush1.msra.mxu0 %v66
    %90 = vmatprep.subr.mxu0 0.0
    %91 = vmatpush1.msra.mxu0 %v67
    %92 = vmatprep.subr.mxu0 0.0
    %93 = vmatpush1.msra.mxu0 %v68
    %94 = vmatprep.subr.mxu0 0.0
    %95 = vmatpush1.msra.mxu0 %v69
    %96 = vmatprep.subr.mxu0 0.0
    %97 = vmatpush1.msra.mxu0 %v70
    %98 = vmatprep.subr.mxu0 0.0
    %99 = vmatpush1.msra.mxu0 %v71
    %100 = vmatprep.subr.mxu0 0.0
    %101 = vmatpush1.msra.mxu0 %v72
    %102 = vmatprep.subr.mxu0 0.0
    %103 = vmatpush1.msra.mxu0 %v73
    %104 = vmatprep.subr.mxu0 0.0
    %105 = vmatpush1.msra.mxu0 %v74
    %106 = vmatprep.subr.mxu0 0.0
    %107 = vmatpush1.msra.mxu0 %v75
    %108 = vmatprep.subr.mxu0 0.0
    %109 = vmatpush1.msra.mxu0 0.0
    %110 = vmatprep.subr.mxu0 0.0
    %111 = vmatpush1.msra.mxu0 0.0
    %112 = vmatprep.subr.mxu0 0.0
    %113 = vmatpush1.msra.mxu0 0.0
    %114 = vmatprep.subr.mxu0 0.0
    %115 = vmatpush1.msra.mxu0 0.0
    %116 = vmatprep.subr.mxu0 0.0
    %117 = vmatpush1.msra.mxu0 0.0
    %118 = vmatprep.subr.mxu0 0.0
    %119 = vmatpush1.msra.mxu0 0.0
    %120 = vmatprep.subr.mxu0 0.0
    %121 = vmatpush1.msra.mxu0 0.0
    %122 = vmatprep.subr.mxu0 0.0
    %123 = vmatpush1.msra.mxu0 0.0
    %124 = vmatprep.subr.mxu0 0.0
    %125 = vmatpush1.msra.mxu0 0.0
    %126 = vmatprep.subr.mxu0 0.0
    %127 = vmatpush1.msra.mxu0 0.0
    %128 = vmatprep.subr.mxu0 0.0
    %129 = vmatpush1.msra.mxu0 0.0
    %130 = vmatprep.subr.mxu0 0.0
    %131 = vmatpush1.msra.mxu0 0.0
    %132 = vmatprep.subr.mxu0 0.0
    %133 = vmatpush1.msra.mxu0 0.0
    %134 = vmatprep.subr.mxu0 0.0
    %135 = vmatpush1.msra.mxu0 0.0
    %136 = vmatprep.subr.mxu0 0.0
    %137 = vmatpush1.msra.mxu0 0.0
    %138 = vmatprep.subr.mxu0 0.0
    %139 = vmatpush1.msra.mxu0 0.0
    %140 = vmatprep.mubr.f32.mxu0 0.0
    %141 = vmatmul.mubr.f32.gmra.mrb[0].mxu0 %v27
    %v142 = vpop.f32.mrb[0].mxu0
    %v143 = vadd.f32 0.0, %v142
    %v144 = vpop.f32.mrb[0].mxu0
    %145 = vmatprep.mubr.f32.mxu0 0.0
    %146 = vmatmul.mubr.f32.gmra.mrb[0].mxu0 %v28
    %v147 = vpop.f32.mrb[0].mxu0
    %v148 = vadd.f32 0.0, %v147
    %v149 = vpop.f32.mrb[0].mxu0
    %150 = vmatprep.mubr.f32.mxu0 0.0
    %151 = vmatmul.mubr.f32.gmra.mrb[0].mxu0 %v29
    %v152 = vpop.f32.mrb[0].mxu0
    %v153 = vadd.f32 0.0, %v152
    %v154 = vpop.f32.mrb[0].mxu0
    %155 = vmatprep.mubr.f32.mxu0 0.0
    %156 = vmatmul.mubr.f32.gmra.mrb[0].mxu0 %v30
    %v157 = vpop.f32.mrb[0].mxu0
    %v158 = vadd.f32 0.0, %v157
    %v159 = vpop.f32.mrb[0].mxu0
    %160 = vmatprep.mubr.f32.mxu0 0.0
    %161 = vmatmul.mubr.f32.gmra.mrb[0].mxu0 %v31
    %v162 = vpop.f32.mrb[0].mxu0
    %v163 = vadd.f32 0.0, %v162
    %v164 = vpop.f32.mrb[0].mxu0
    %165 = vmatprep.mubr.f32.mxu0 0.0
    %166 = vmatmul.mubr.f32.gmra.mrb[0].mxu0 %v32
    %v167 = vpop.f32.mrb[0].mxu0
    %v168 = vadd.f32 0.0, %v167
    %v169 = vpop.f32.mrb[0].mxu0
    %170 = vmatprep.mubr.f32.mxu0 0.0
    %171 = vmatmul.mubr.f32.gmra.mrb[0].mxu0 %v33
    %v172 = vpop.f32.mrb[0].mxu0
    %v173 = vadd.f32 0.0, %v172
    %v174 = vpop.f32.mrb[0].mxu0
    %175 = vmatprep.mubr.f32.mxu0 0.0
    %176 = vmatmul.mubr.f32.gmra.mrb[0].mxu0 %v34
    %v177 = vpop.f32.mrb[0].mxu0
    %v178 = vadd.f32 0.0, %v177
    %v179 = vpop.f32.mrb[0].mxu0
    %180 = vmatprep.mubr.f32.mxu0 0.0
    %181 = vmatmul.mubr.f32.gmra.mrb[0].mxu0 %v35
    %v182 = vpop.f32.mrb[0].mxu0
    %v183 = vadd.f32 0.0, %v182
    %v184 = vpop.f32.mrb[0].mxu0
    %185 = vmatprep.mubr.f32.mxu0 0.0
    %186 = vmatmul.mubr.f32.gmra.mrb[0].mxu0 %v36
    %v187 = vpop.f32.mrb[0].mxu0
    %v188 = vadd.f32 0.0, %v187
    %v189 = vpop.f32.mrb[0].mxu0
    %190 = vmatprep.mubr.f32.mxu0 0.0
    %191 = vmatmul.mubr.f32.gmra.mrb[0].mxu0 %v37
    %v192 = vpop.f32.mrb[0].mxu0
    %v193 = vadd.f32 0.0, %v192
    %v194 = vpop.f32.mrb[0].mxu0
    %195 = vmatprep.mubr.f32.mxu0 0.0
    %196 = vmatmul.mubr.f32.gmra.mrb[0].mxu0 %v38
    %v197 = vpop.f32.mrb[0].mxu0
    %v198 = vadd.f32 0.0, %v197
    %v199 = vpop.f32.mrb[0].mxu0
    %200 = vmatprep.mubr.f32.mxu0 0.0
    %201 = vmatmul.mubr.f32.gmra.mrb[0].mxu0 %v39
    %v202 = vpop.f32.mrb[0].mxu0
    %v203 = vadd.f32 0.0, %v202
    %v204 = vpop.f32.mrb[0].mxu0
    %205 = vmatprep.mubr.f32.mxu0 0.0
    %206 = vmatmul.mubr.f32.gmra.mrb[0].mxu0 %v40
    %v207 = vpop.f32.mrb[0].mxu0
    %v208 = vadd.f32 0.0, %v207
    %v209 = vpop.f32.mrb[0].mxu0
    %210 = vmatprep.mubr.f32.mxu0 0.0
    %211 = vmatmul.mubr.f32.gmra.mrb[0].mxu0 %v41
    %v212 = vpop.f32.mrb[0].mxu0
    %v213 = vadd.f32 0.0, %v212
    %v214 = vpop.f32.mrb[0].mxu0
    %215 = vmatprep.mubr.f32.mxu0 0.0
    %216 = vmatmul.mubr.f32.gmra.mrb[0].mxu0 %v42
    %v217 = vpop.f32.mrb[0].mxu0
    %v218 = vadd.f32 0.0, %v217
    %v219 = vpop.f32.mrb[0].mxu0
    %220 = vdwg.mxu0
    %v221 = vmul.f32 %v143, 0.2
    %v222 = vmul.f32 %v148, 0.2
    %v223 = vmul.f32 %v153, 0.2
    %v224 = vmul.f32 %v158, 0.2
    %v225 = vmul.f32 %v163, 0.2
    %v226 = vmul.f32 %v168, 0.2
    %v227 = vmul.f32 %v173, 0.2
    %v228 = vmul.f32 %v178, 0.2
    %v229 = vmul.f32 %v183, 0.2
    %v230 = vmul.f32 %v188, 0.2
    %v231 = vmul.f32 %v193, 0.2
    %v232 = vmul.f32 %v198, 0.2
    %v233 = vmul.f32 %v203, 0.2
    %v234 = vmul.f32 %v208, 0.2
    %v235 = vmul.f32 %v213, 0.2
    %v236 = vmul.f32 %v218, 0.2
    %v237 = vsub.f32 1.0, %v221
    %v238 = vsub.f32 1.0, %v222
    %v239 = vsub.f32 1.0, %v223
    %v240 = vsub.f32 1.0, %v224
    %v241 = vsub.f32 1.0, %v225
    %v242 = vsub.f32 1.0, %v226
    %v243 = vsub.f32 1.0, %v227
    %v244 = vsub.f32 1.0, %v228
    %v245 = vsub.f32 1.0, %v229
    %v246 = vsub.f32 1.0, %v230
    %v247 = vsub.f32 1.0, %v231
    %v248 = vsub.f32 1.0, %v232
    %v249 = vsub.f32 1.0, %v233
    %v250 = vsub.f32 1.0, %v234
    %v251 = vsub.f32 1.0, %v235
    %v252 = vsub.f32 1.0, %v236
    %v253 = vmul.f32 %v59, 0.1
    %v255 = vlaneseq
    %v256 = vshrl.u32 %v255, 7
    %v257 = vsub.s32 0, %v256
    %v258 = vrot.slane %v253, %v257
    %v260 = vadd.f32 %v237, %v258
    %v261 = vadd.f32 %v238, %v258
    %v262 = vadd.f32 %v239, %v258
    %v263 = vadd.f32 %v240, %v258
    %v264 = vadd.f32 %v241, %v258
    %v265 = vadd.f32 %v242, %v258
    %v266 = vadd.f32 %v243, %v258
    %v267 = vadd.f32 %v244, %v258
    %v268 = vadd.f32 %v245, %v258
    %v269 = vadd.f32 %v246, %v258
    %v270 = vadd.f32 %v247, %v258
    %v271 = vadd.f32 %v248, %v258
    %v272 = vadd.f32 %v249, %v258
    %v273 = vadd.f32 %v250, %v258
    %v274 = vadd.f32 %v251, %v258
    %v275 = vadd.f32 %v252, %v258
    %v276 = vmul.f32 %v43, 0.1
    %v277 = vmul.f32 %v44, 0.1
    %v278 = vmul.f32 %v45, 0.1
    %v279 = vmul.f32 %v46, 0.1
    %v280 = vmul.f32 %v47, 0.1
    %v281 = vmul.f32 %v48, 0.1
    %v282 = vmul.f32 %v49, 0.1
    %v283 = vmul.f32 %v50, 0.1
    %v284 = vmul.f32 %v51, 0.1
    %v285 = vmul.f32 %v52, 0.1
    %v286 = vmul.f32 %v53, 0.1
    %v287 = vmul.f32 %v54, 0.1
    %v288 = vmul.f32 %v55, 0.1
    %v289 = vmul.f32 %v56, 0.1
    %v290 = vmul.f32 %v57, 0.1
    %v291 = vmul.f32 %v58, 0.1
    %v292 = vsub.f32 1.0, %v276
    %v293 = vsub.f32 1.0, %v277
    %v294 = vsub.f32 1.0, %v278
    %v295 = vsub.f32 1.0, %v279
    %v296 = vsub.f32 1.0, %v280
    %v297 = vsub.f32 1.0, %v281
    %v298 = vsub.f32 1.0, %v282
    %v299 = vsub.f32 1.0, %v283
    %v300 = vsub.f32 1.0, %v284
    %v301 = vsub.f32 1.0, %v285
    %v302 = vsub.f32 1.0, %v286
    %v303 = vsub.f32 1.0, %v287
    %v304 = vsub.f32 1.0, %v288
    %v305 = vsub.f32 1.0, %v289
    %v306 = vsub.f32 1.0, %v290
    %v307 = vsub.f32 1.0, %v291
    %v308 = vmul.f32 %v260, %v260
    %v309 = vmul.f32 %v261, %v261
    %v310 = vmul.f32 %v262, %v262
    %v311 = vmul.f32 %v263, %v263
    %v312 = vmul.f32 %v264, %v264
    %v313 = vmul.f32 %v265, %v265
    %v314 = vmul.f32 %v266, %v266
    %v315 = vmul.f32 %v267, %v267
    %v316 = vmul.f32 %v268, %v268
    %v317 = vmul.f32 %v269, %v269
    %v318 = vmul.f32 %v270, %v270
    %v319 = vmul.f32 %v271, %v271
    %v320 = vmul.f32 %v272, %v272
    %v321 = vmul.f32 %v273, %v273
    %v322 = vmul.f32 %v274, %v274
    %v323 = vmul.f32 %v275, %v275
    %325 = vset.pattern.permute.xlu0 0
    %326 = vperm.xlu0 %325, %v43
    %v327 = vpop.permute.xlu0 %326
    %330 = vset.pattern.permute.xlu0 0
    %331 = vperm.xlu0 %330, %v44
    %v332 = vpop.permute.xlu0 %331
    %335 = vset.pattern.permute.xlu0 0
    %336 = vperm.xlu0 %335, %v45
    %v337 = vpop.permute.xlu0 %336
    %340 = vset.pattern.permute.xlu0 0
    %341 = vperm.xlu0 %340, %v46
    %v342 = vpop.permute.xlu0 %341
    %345 = vset.pattern.permute.xlu0 0
    %346 = vperm.xlu0 %345, %v47
    %v347 = vpop.permute.xlu0 %346
    %350 = vset.pattern.permute.xlu0 0
    %351 = vperm.xlu0 %350, %v48
    %v352 = vpop.permute.xlu0 %351
    %355 = vset.pattern.permute.xlu0 0
    %356 = vperm.xlu0 %355, %v49
    %v357 = vpop.permute.xlu0 %356
    %360 = vset.pattern.permute.xlu0 0
    %361 = vperm.xlu0 %360, %v50
    %v362 = vpop.permute.xlu0 %361
    %365 = vset.pattern.permute.xlu0 0
    %366 = vperm.xlu0 %365, %v51
    %v367 = vpop.permute.xlu0 %366
    %370 = vset.pattern.permute.xlu0 0
    %371 = vperm.xlu0 %370, %v52
    %v372 = vpop.permute.xlu0 %371
    %375 = vset.pattern.permute.xlu0 0
    %376 = vperm.xlu0 %375, %v53
    %v377 = vpop.permute.xlu0 %376
    %380 = vset.pattern.permute.xlu0 0
    %381 = vperm.xlu0 %380, %v54
    %v382 = vpop.permute.xlu0 %381
    %385 = vset.pattern.permute.xlu0 0
    %386 = vperm.xlu0 %385, %v55
    %v387 = vpop.permute.xlu0 %386
    %390 = vset.pattern.permute.xlu0 0
    %391 = vperm.xlu0 %390, %v56
    %v392 = vpop.permute.xlu0 %391
    %395 = vset.pattern.permute.xlu0 0
    %396 = vperm.xlu0 %395, %v57
    %v397 = vpop.permute.xlu0 %396
    %400 = vset.pattern.permute.xlu0 0
    %401 = vperm.xlu0 %400, %v58
    %v402 = vpop.permute.xlu0 %401
    %v404 = vmul.f32 %v308, %v327
    %v405 = vmul.f32 %v309, %v332
    %v406 = vmul.f32 %v310, %v337
    %v407 = vmul.f32 %v311, %v342
    %v408 = vmul.f32 %v312, %v347
    %v409 = vmul.f32 %v313, %v352
    %v410 = vmul.f32 %v314, %v357
    %v411 = vmul.f32 %v315, %v362
    %v412 = vmul.f32 %v316, %v367
    %v413 = vmul.f32 %v317, %v372
    %v414 = vmul.f32 %v318, %v377
    %v415 = vmul.f32 %v319, %v382
    %v416 = vmul.f32 %v320, %v387
    %v417 = vmul.f32 %v321, %v392
    %v418 = vmul.f32 %v322, %v397
    %v419 = vmul.f32 %v323, %v402
    %v420 = vmul.f32 %v260, 2.0
    %v421 = vmul.f32 %v261, 2.0
    %v422 = vmul.f32 %v262, 2.0
    %v423 = vmul.f32 %v263, 2.0
    %v424 = vmul.f32 %v264, 2.0
    %v425 = vmul.f32 %v265, 2.0
    %v426 = vmul.f32 %v266, 2.0
    %v427 = vmul.f32 %v267, 2.0
    %v428 = vmul.f32 %v268, 2.0
    %v429 = vmul.f32 %v269, 2.0
    %v430 = vmul.f32 %v270, 2.0
    %v431 = vmul.f32 %v271, 2.0
    %v432 = vmul.f32 %v272, 2.0
    %v433 = vmul.f32 %v273, 2.0
    %v434 = vmul.f32 %v274, 2.0
    %v435 = vmul.f32 %v275, 2.0
    %437 = vset.pattern.permute.xlu0 0
    %438 = vperm.xlu0 %437, %v292
    %v439 = vpop.permute.xlu0 %438
    %442 = vset.pattern.permute.xlu0 0
    %443 = vperm.xlu0 %442, %v293
    %v444 = vpop.permute.xlu0 %443
    %447 = vset.pattern.permute.xlu0 0
    %448 = vperm.xlu0 %447, %v294
    %v449 = vpop.permute.xlu0 %448
    %452 = vset.pattern.permute.xlu0 0
    %453 = vperm.xlu0 %452, %v295
    %v454 = vpop.permute.xlu0 %453
    %457 = vset.pattern.permute.xlu0 0
    %458 = vperm.xlu0 %457, %v296
    %v459 = vpop.permute.xlu0 %458
    %462 = vset.pattern.permute.xlu0 0
    %463 = vperm.xlu0 %462, %v297
    %v464 = vpop.permute.xlu0 %463
    %467 = vset.pattern.permute.xlu0 0
    %468 = vperm.xlu0 %467, %v298
    %v469 = vpop.permute.xlu0 %468
    %472 = vset.pattern.permute.xlu0 0
    %473 = vperm.xlu0 %472, %v299
    %v474 = vpop.permute.xlu0 %473
    %477 = vset.pattern.permute.xlu0 0
    %478 = vperm.xlu0 %477, %v300
    %v479 = vpop.permute.xlu0 %478
    %482 = vset.pattern.permute.xlu0 0
    %483 = vperm.xlu0 %482, %v301
    %v484 = vpop.permute.xlu0 %483
    %487 = vset.pattern.permute.xlu0 0
    %488 = vperm.xlu0 %487, %v302
    %v489 = vpop.permute.xlu0 %488
    %492 = vset.pattern.permute.xlu0 0
    %493 = vperm.xlu0 %492, %v303
    %v494 = vpop.permute.xlu0 %493
    %497 = vset.pattern.permute.xlu0 0
    %498 = vperm.xlu0 %497, %v304
    %v499 = vpop.permute.xlu0 %498
    %502 = vset.pattern.permute.xlu0 0
    %503 = vperm.xlu0 %502, %v305
    %v504 = vpop.permute.xlu0 %503
    %507 = vset.pattern.permute.xlu0 0
    %508 = vperm.xlu0 %507, %v306
    %v509 = vpop.permute.xlu0 %508
    %512 = vset.pattern.permute.xlu0 0
    %513 = vperm.xlu0 %512, %v307
    %v514 = vpop.permute.xlu0 %513
    %v516 = vmul.f32 %v420, %v439
    %v517 = vmul.f32 %v421, %v444
    %v518 = vmul.f32 %v422, %v449
    %v519 = vmul.f32 %v423, %v454
    %v520 = vmul.f32 %v424, %v459
    %v521 = vmul.f32 %v425, %v464
    %v522 = vmul.f32 %v426, %v469
    %v523 = vmul.f32 %v427, %v474
    %v524 = vmul.f32 %v428, %v479
    %v525 = vmul.f32 %v429, %v484
    %v526 = vmul.f32 %v430, %v489
    %v527 = vmul.f32 %v431, %v494
    %v528 = vmul.f32 %v432, %v499
    %v529 = vmul.f32 %v433, %v504
    %v530 = vmul.f32 %v434, %v509
    %v531 = vmul.f32 %v435, %v514
    %v532 = vmul.f32 %v516, %v143
    %v533 = vmul.f32 %v517, %v148
    %v534 = vmul.f32 %v518, %v153
    %v535 = vmul.f32 %v519, %v158
    %v536 = vmul.f32 %v520, %v163
    %v537 = vmul.f32 %v521, %v168
    %v538 = vmul.f32 %v522, %v173
    %v539 = vmul.f32 %v523, %v178
    %v540 = vmul.f32 %v524, %v183
    %v541 = vmul.f32 %v525, %v188
    %v542 = vmul.f32 %v526, %v193
    %v543 = vmul.f32 %v527, %v198
    %v544 = vmul.f32 %v528, %v203
    %v545 = vmul.f32 %v529, %v208
    %v546 = vmul.f32 %v530, %v213
    %v547 = vmul.f32 %v531, %v218
    %v548 = vsub.f32 %v404, %v532
    %v549 = vsub.f32 %v405, %v533
    %v550 = vsub.f32 %v406, %v534
    %v551 = vsub.f32 %v407, %v535
    %v552 = vsub.f32 %v408, %v536
    %v553 = vsub.f32 %v409, %v537
    %v554 = vsub.f32 %v410, %v538
    %v555 = vsub.f32 %v411, %v539
    %v556 = vsub.f32 %v412, %v540
    %v557 = vsub.f32 %v413, %v541
    %v558 = vsub.f32 %v414, %v542
    %v559 = vsub.f32 %v415, %v543
    %v560 = vsub.f32 %v416, %v544
    %v561 = vsub.f32 %v417, %v545
    %v562 = vsub.f32 %v418, %v546
    %v563 = vsub.f32 %v419, %v547
    %v564 = vmul.f32 %v292, %v292
    %v565 = vmul.f32 %v293, %v293
    %v566 = vmul.f32 %v294, %v294
    %v567 = vmul.f32 %v295, %v295
    %v568 = vmul.f32 %v296, %v296
    %v569 = vmul.f32 %v297, %v297
    %v570 = vmul.f32 %v298, %v298
    %v571 = vmul.f32 %v299, %v299
    %v572 = vmul.f32 %v300, %v300
    %v573 = vmul.f32 %v301, %v301
    %v574 = vmul.f32 %v302, %v302
    %v575 = vmul.f32 %v303, %v303
    %v576 = vmul.f32 %v304, %v304
    %v577 = vmul.f32 %v305, %v305
    %v578 = vmul.f32 %v306, %v306
    %v579 = vmul.f32 %v307, %v307
    %581 = vset.pattern.permute.xlu0 0
    %582 = vperm.xlu0 %581, %v564
    %v583 = vpop.permute.xlu0 %582
    %586 = vset.pattern.permute.xlu0 0
    %587 = vperm.xlu0 %586, %v565
    %v588 = vpop.permute.xlu0 %587
    %591 = vset.pattern.permute.xlu0 0
    %592 = vperm.xlu0 %591, %v566
    %v593 = vpop.permute.xlu0 %592
    %596 = vset.pattern.permute.xlu0 0
    %597 = vperm.xlu0 %596, %v567
    %v598 = vpop.permute.xlu0 %597
    %601 = vset.pattern.permute.xlu0 0
    %602 = vperm.xlu0 %601, %v568
    %v603 = vpop.permute.xlu0 %602
    %606 = vset.pattern.permute.xlu0 0
    %607 = vperm.xlu0 %606, %v569
    %v608 = vpop.permute.xlu0 %607
    %611 = vset.pattern.permute.xlu0 0
    %612 = vperm.xlu0 %611, %v570
    %v613 = vpop.permute.xlu0 %612
    %616 = vset.pattern.permute.xlu0 0
    %617 = vperm.xlu0 %616, %v571
    %v618 = vpop.permute.xlu0 %617
    %621 = vset.pattern.permute.xlu0 0
    %622 = vperm.xlu0 %621, %v572
    %v623 = vpop.permute.xlu0 %622
    %626 = vset.pattern.permute.xlu0 0
    %627 = vperm.xlu0 %626, %v573
    %v628 = vpop.permute.xlu0 %627
    %631 = vset.pattern.permute.xlu0 0
    %632 = vperm.xlu0 %631, %v574
    %v633 = vpop.permute.xlu0 %632
    %636 = vset.pattern.permute.xlu0 0
    %637 = vperm.xlu0 %636, %v575
    %v638 = vpop.permute.xlu0 %637
    %641 = vset.pattern.permute.xlu0 0
    %642 = vperm.xlu0 %641, %v576
    %v643 = vpop.permute.xlu0 %642
    %646 = vset.pattern.permute.xlu0 0
    %647 = vperm.xlu0 %646, %v577
    %v648 = vpop.permute.xlu0 %647
    %651 = vset.pattern.permute.xlu0 0
    %652 = vperm.xlu0 %651, %v578
    %v653 = vpop.permute.xlu0 %652
    %656 = vset.pattern.permute.xlu0 0
    %657 = vperm.xlu0 %656, %v579
    %v658 = vpop.permute.xlu0 %657
    %v661 = vlaneseq
    %v662 = vshrl.u32 %v661, 7
    %v663 = vsub.s32 0, %v662
    %v664 = vrot.slane %v59, %v663
    %v666 = vmul.f32 %v583, %v664
    %v667 = vmul.f32 %v588, %v664
    %v668 = vmul.f32 %v593, %v664
    %v669 = vmul.f32 %v598, %v664
    %v670 = vmul.f32 %v603, %v664
    %v671 = vmul.f32 %v608, %v664
    %v672 = vmul.f32 %v613, %v664
    %v673 = vmul.f32 %v618, %v664
    %v674 = vmul.f32 %v623, %v664
    %v675 = vmul.f32 %v628, %v664
    %v676 = vmul.f32 %v633, %v664
    %v677 = vmul.f32 %v638, %v664
    %v678 = vmul.f32 %v643, %v664
    %v679 = vmul.f32 %v648, %v664
    %v680 = vmul.f32 %v653, %v664
    %v681 = vmul.f32 %v658, %v664
    %v682 = vadd.f32 %v548, %v666
    %v683 = vadd.f32 %v549, %v667
    %v684 = vadd.f32 %v550, %v668
    %v685 = vadd.f32 %v551, %v669
    %v686 = vadd.f32 %v552, %v670
    %v687 = vadd.f32 %v553, %v671
    %v688 = vadd.f32 %v554, %v672
    %v689 = vadd.f32 %v555, %v673
    %v690 = vadd.f32 %v556, %v674
    %v691 = vadd.f32 %v557, %v675
    %v692 = vadd.f32 %v558, %v676
    %v693 = vadd.f32 %v559, %v677
    %v694 = vadd.f32 %v560, %v678
    %v695 = vadd.f32 %v561, %v679
    %v696 = vadd.f32 %v562, %v680
    %v697 = vadd.f32 %v563, %v681
    %v698 = vmul.f32 %v43, 0.01
    %v699 = vmul.f32 %v44, 0.01
    %v700 = vmul.f32 %v45, 0.01
    %v701 = vmul.f32 %v46, 0.01
    %v702 = vmul.f32 %v47, 0.01
    %v703 = vmul.f32 %v48, 0.01
    %v704 = vmul.f32 %v49, 0.01
    %v705 = vmul.f32 %v50, 0.01
    %v706 = vmul.f32 %v51, 0.01
    %v707 = vmul.f32 %v52, 0.01
    %v708 = vmul.f32 %v53, 0.01
    %v709 = vmul.f32 %v54, 0.01
    %v710 = vmul.f32 %v55, 0.01
    %v711 = vmul.f32 %v56, 0.01
    %v712 = vmul.f32 %v57, 0.01
    %v713 = vmul.f32 %v58, 0.01
    %715 = vset.pattern.permute.xlu0 0
    %716 = vperm.xlu0 %715, %v698
    %v717 = vpop.permute.xlu0 %716
    %720 = vset.pattern.permute.xlu0 0
    %721 = vperm.xlu0 %720, %v699
    %v722 = vpop.permute.xlu0 %721
    %725 = vset.pattern.permute.xlu0 0
    %726 = vperm.xlu0 %725, %v700
    %v727 = vpop.permute.xlu0 %726
    %730 = vset.pattern.permute.xlu0 0
    %731 = vperm.xlu0 %730, %v701
    %v732 = vpop.permute.xlu0 %731
    %735 = vset.pattern.permute.xlu0 0
    %736 = vperm.xlu0 %735, %v702
    %v737 = vpop.permute.xlu0 %736
    %740 = vset.pattern.permute.xlu0 0
    %741 = vperm.xlu0 %740, %v703
    %v742 = vpop.permute.xlu0 %741
    %745 = vset.pattern.permute.xlu0 0
    %746 = vperm.xlu0 %745, %v704
    %v747 = vpop.permute.xlu0 %746
    %750 = vset.pattern.permute.xlu0 0
    %751 = vperm.xlu0 %750, %v705
    %v752 = vpop.permute.xlu0 %751
    %755 = vset.pattern.permute.xlu0 0
    %756 = vperm.xlu0 %755, %v706
    %v757 = vpop.permute.xlu0 %756
    %760 = vset.pattern.permute.xlu0 0
    %761 = vperm.xlu0 %760, %v707
    %v762 = vpop.permute.xlu0 %761
    %765 = vset.pattern.permute.xlu0 0
    %766 = vperm.xlu0 %765, %v708
    %v767 = vpop.permute.xlu0 %766
    %770 = vset.pattern.permute.xlu0 0
    %771 = vperm.xlu0 %770, %v709
    %v772 = vpop.permute.xlu0 %771
    %775 = vset.pattern.permute.xlu0 0
    %776 = vperm.xlu0 %775, %v710
    %v777 = vpop.permute.xlu0 %776
    %780 = vset.pattern.permute.xlu0 0
    %781 = vperm.xlu0 %780, %v711
    %v782 = vpop.permute.xlu0 %781
    %785 = vset.pattern.permute.xlu0 0
    %786 = vperm.xlu0 %785, %v712
    %v787 = vpop.permute.xlu0 %786
    %790 = vset.pattern.permute.xlu0 0
    %791 = vperm.xlu0 %790, %v713
    %v792 = vpop.permute.xlu0 %791
    %v794 = vmul.f32 %v717, %v664
    %v795 = vmul.f32 %v722, %v664
    %v796 = vmul.f32 %v727, %v664
    %v797 = vmul.f32 %v732, %v664
    %v798 = vmul.f32 %v737, %v664
    %v799 = vmul.f32 %v742, %v664
    %v800 = vmul.f32 %v747, %v664
    %v801 = vmul.f32 %v752, %v664
    %v802 = vmul.f32 %v757, %v664
    %v803 = vmul.f32 %v762, %v664
    %v804 = vmul.f32 %v767, %v664
    %v805 = vmul.f32 %v772, %v664
    %v806 = vmul.f32 %v777, %v664
    %v807 = vmul.f32 %v782, %v664
    %v808 = vmul.f32 %v787, %v664
    %v809 = vmul.f32 %v792, %v664
    %v810 = vadd.f32 %v237, %v794
    %v811 = vadd.f32 %v238, %v795
    %v812 = vadd.f32 %v239, %v796
    %v813 = vadd.f32 %v240, %v797
    %v814 = vadd.f32 %v241, %v798
    %v815 = vadd.f32 %v242, %v799
    %v816 = vadd.f32 %v243, %v800
    %v817 = vadd.f32 %v244, %v801
    %v818 = vadd.f32 %v245, %v802
    %v819 = vadd.f32 %v246, %v803
    %v820 = vadd.f32 %v247, %v804
    %v821 = vadd.f32 %v248, %v805
    %v822 = vadd.f32 %v249, %v806
    %v823 = vadd.f32 %v250, %v807
    %v824 = vadd.f32 %v251, %v808
    %v825 = vadd.f32 %v252, %v809
    %v826 = vmax.f32 %v810, 1e-15
    %v827 = vmax.f32 %v811, 1e-15
    %v828 = vmax.f32 %v812, 1e-15
    %v829 = vmax.f32 %v813, 1e-15
    %v830 = vmax.f32 %v814, 1e-15
    %v831 = vmax.f32 %v815, 1e-15
    %v832 = vmax.f32 %v816, 1e-15
    %v833 = vmax.f32 %v817, 1e-15
    %v834 = vmax.f32 %v818, 1e-15
    %v835 = vmax.f32 %v819, 1e-15
    %v836 = vmax.f32 %v820, 1e-15
    %v837 = vmax.f32 %v821, 1e-15
    %v838 = vmax.f32 %v822, 1e-15
    %v839 = vmax.f32 %v823, 1e-15
    %v840 = vmax.f32 %v824, 1e-15
    %v841 = vmax.f32 %v825, 1e-15
    %v842 = vmax.f32 %v682, 0.0
    %v843 = vmax.f32 %v683, 0.0
    %v844 = vmax.f32 %v684, 0.0
    %v845 = vmax.f32 %v685, 0.0
    %v846 = vmax.f32 %v686, 0.0
    %v847 = vmax.f32 %v687, 0.0
    %v848 = vmax.f32 %v688, 0.0
    %v849 = vmax.f32 %v689, 0.0
    %v850 = vmax.f32 %v690, 0.0
    %v851 = vmax.f32 %v691, 0.0
    %v852 = vmax.f32 %v692, 0.0
    %v853 = vmax.f32 %v693, 0.0
    %v854 = vmax.f32 %v694, 0.0
    %v855 = vmax.f32 %v695, 0.0
    %v856 = vmax.f32 %v696, 0.0
    %v857 = vmax.f32 %v697, 0.0
    %v858 = vrsqrt.pop %v842
    %v859 = vmul.f32 %v842, %v858
    %vm860 = vcmp.eq.f32.partialorder %v842, inf
    %v861 = vsel %vm860, %v842, %v859
    %vm862 = vcmp.eq.f32.partialorder %v842, 0.0
    %v863 = vand.u32 %v842, 2147483648
    %v864 = vsel %vm862, %v863, %v861
    %v865 = vrsqrt.pop %v843
    %v866 = vmul.f32 %v843, %v865
    %vm867 = vcmp.eq.f32.partialorder %v843, inf
    %v868 = vsel %vm867, %v843, %v866
    %vm869 = vcmp.eq.f32.partialorder %v843, 0.0
    %v870 = vand.u32 %v843, 2147483648
    %v871 = vsel %vm869, %v870, %v868
    %v872 = vrsqrt.pop %v844
    %v873 = vmul.f32 %v844, %v872
    %vm874 = vcmp.eq.f32.partialorder %v844, inf
    %v875 = vsel %vm874, %v844, %v873
    %vm876 = vcmp.eq.f32.partialorder %v844, 0.0
    %v877 = vand.u32 %v844, 2147483648
    %v878 = vsel %vm876, %v877, %v875
    %v879 = vrsqrt.pop %v845
    %v880 = vmul.f32 %v845, %v879
    %vm881 = vcmp.eq.f32.partialorder %v845, inf
    %v882 = vsel %vm881, %v845, %v880
    %vm883 = vcmp.eq.f32.partialorder %v845, 0.0
    %v884 = vand.u32 %v845, 2147483648
    %v885 = vsel %vm883, %v884, %v882
    %v886 = vrsqrt.pop %v846
    %v887 = vmul.f32 %v846, %v886
    %vm888 = vcmp.eq.f32.partialorder %v846, inf
    %v889 = vsel %vm888, %v846, %v887
    %vm890 = vcmp.eq.f32.partialorder %v846, 0.0
    %v891 = vand.u32 %v846, 2147483648
    %v892 = vsel %vm890, %v891, %v889
    %v893 = vrsqrt.pop %v847
    %v894 = vmul.f32 %v847, %v893
    %vm895 = vcmp.eq.f32.partialorder %v847, inf
    %v896 = vsel %vm895, %v847, %v894
    %vm897 = vcmp.eq.f32.partialorder %v847, 0.0
    %v898 = vand.u32 %v847, 2147483648
    %v899 = vsel %vm897, %v898, %v896
    %v900 = vrsqrt.pop %v848
    %v901 = vmul.f32 %v848, %v900
    %vm902 = vcmp.eq.f32.partialorder %v848, inf
    %v903 = vsel %vm902, %v848, %v901
    %vm904 = vcmp.eq.f32.partialorder %v848, 0.0
    %v905 = vand.u32 %v848, 2147483648
    %v906 = vsel %vm904, %v905, %v903
    %v907 = vrsqrt.pop %v849
    %v908 = vmul.f32 %v849, %v907
    %vm909 = vcmp.eq.f32.partialorder %v849, inf
    %v910 = vsel %vm909, %v849, %v908
    %vm911 = vcmp.eq.f32.partialorder %v849, 0.0
    %v912 = vand.u32 %v849, 2147483648
    %v913 = vsel %vm911, %v912, %v910
    %v914 = vrsqrt.pop %v850
    %v915 = vmul.f32 %v850, %v914
    %vm916 = vcmp.eq.f32.partialorder %v850, inf
    %v917 = vsel %vm916, %v850, %v915
    %vm918 = vcmp.eq.f32.partialorder %v850, 0.0
    %v919 = vand.u32 %v850, 2147483648
    %v920 = vsel %vm918, %v919, %v917
    %v921 = vrsqrt.pop %v851
    %v922 = vmul.f32 %v851, %v921
    %vm923 = vcmp.eq.f32.partialorder %v851, inf
    %v924 = vsel %vm923, %v851, %v922
    %vm925 = vcmp.eq.f32.partialorder %v851, 0.0
    %v926 = vand.u32 %v851, 2147483648
    %v927 = vsel %vm925, %v926, %v924
    %v928 = vrsqrt.pop %v852
    %v929 = vmul.f32 %v852, %v928
    %vm930 = vcmp.eq.f32.partialorder %v852, inf
    %v931 = vsel %vm930, %v852, %v929
    %vm932 = vcmp.eq.f32.partialorder %v852, 0.0
    %v933 = vand.u32 %v852, 2147483648
    %v934 = vsel %vm932, %v933, %v931
    %v935 = vrsqrt.pop %v853
    %v936 = vmul.f32 %v853, %v935
    %vm937 = vcmp.eq.f32.partialorder %v853, inf
    %v938 = vsel %vm937, %v853, %v936
    %vm939 = vcmp.eq.f32.partialorder %v853, 0.0
    %v940 = vand.u32 %v853, 2147483648
    %v941 = vsel %vm939, %v940, %v938
    %v942 = vrsqrt.pop %v854
    %v943 = vmul.f32 %v854, %v942
    %vm944 = vcmp.eq.f32.partialorder %v854, inf
    %v945 = vsel %vm944, %v854, %v943
    %vm946 = vcmp.eq.f32.partialorder %v854, 0.0
    %v947 = vand.u32 %v854, 2147483648
    %v948 = vsel %vm946, %v947, %v945
    %v949 = vrsqrt.pop %v855
    %v950 = vmul.f32 %v855, %v949
    %vm951 = vcmp.eq.f32.partialorder %v855, inf
    %v952 = vsel %vm951, %v855, %v950
    %vm953 = vcmp.eq.f32.partialorder %v855, 0.0
    %v954 = vand.u32 %v855, 2147483648
    %v955 = vsel %vm953, %v954, %v952
    %v956 = vrsqrt.pop %v856
    %v957 = vmul.f32 %v856, %v956
    %vm958 = vcmp.eq.f32.partialorder %v856, inf
    %v959 = vsel %vm958, %v856, %v957
    %vm960 = vcmp.eq.f32.partialorder %v856, 0.0
    %v961 = vand.u32 %v856, 2147483648
    %v962 = vsel %vm960, %v961, %v959
    %v963 = vrsqrt.pop %v857
    %v964 = vmul.f32 %v857, %v963
    %vm965 = vcmp.eq.f32.partialorder %v857, inf
    %v966 = vsel %vm965, %v857, %v964
    %vm967 = vcmp.eq.f32.partialorder %v857, 0.0
    %v968 = vand.u32 %v857, 2147483648
    %v969 = vsel %vm967, %v968, %v966
    %v970 = vrcp.pop %v826
    %v971 = vrcp.pop %v827
    %v972 = vrcp.pop %v828
    %v973 = vrcp.pop %v829
    %v974 = vrcp.pop %v830
    %v975 = vrcp.pop %v831
    %v976 = vrcp.pop %v832
    %v977 = vrcp.pop %v833
    %v978 = vrcp.pop %v834
    %v979 = vrcp.pop %v835
    %v980 = vrcp.pop %v836
    %v981 = vrcp.pop %v837
    %v982 = vrcp.pop %v838
    %v983 = vrcp.pop %v839
    %v984 = vrcp.pop %v840
    %v985 = vrcp.pop %v841
    %v986 = vmul.f32 %v864, %v970
    %v987 = vmul.f32 %v871, %v971
    %v988 = vmul.f32 %v878, %v972
    %v989 = vmul.f32 %v885, %v973
    %v990 = vmul.f32 %v892, %v974
    %v991 = vmul.f32 %v899, %v975
    %v992 = vmul.f32 %v906, %v976
    %v993 = vmul.f32 %v913, %v977
    %v994 = vmul.f32 %v920, %v978
    %v995 = vmul.f32 %v927, %v979
    %v996 = vmul.f32 %v934, %v980
    %v997 = vmul.f32 %v941, %v981
    %v998 = vmul.f32 %v948, %v982
    %v999 = vmul.f32 %v955, %v983
    %v1000 = vmul.f32 %v962, %v984
    %v1001 = vmul.f32 %v969, %v985
    %v1002 = vmul.f32 %v986, 0.31622776
    %v1003 = vmul.f32 %v987, 0.31622776
    %v1004 = vmul.f32 %v988, 0.31622776
    %v1005 = vmul.f32 %v989, 0.31622776
    %v1006 = vmul.f32 %v990, 0.31622776
    %v1007 = vmul.f32 %v991, 0.31622776
    %v1008 = vmul.f32 %v992, 0.31622776
    %v1009 = vmul.f32 %v993, 0.31622776
    %v1010 = vmul.f32 %v994, 0.31622776
    %v1011 = vmul.f32 %v995, 0.31622776
    %v1012 = vmul.f32 %v996, 0.31622776
    %v1013 = vmul.f32 %v997, 0.31622776
    %v1014 = vmul.f32 %v998, 0.31622776
    %v1015 = vmul.f32 %v999, 0.31622776
    %v1016 = vmul.f32 %v1000, 0.31622776
    %v1017 = vmul.f32 %v1001, 0.31622776
    %v1018 = vmax.f32 %v1002, -0.99999
    %v1019 = vmax.f32 %v1003, -0.99999
    %v1020 = vmax.f32 %v1004, -0.99999
    %v1021 = vmax.f32 %v1005, -0.99999
    %v1022 = vmax.f32 %v1006, -0.99999
    %v1023 = vmax.f32 %v1007, -0.99999
    %v1024 = vmax.f32 %v1008, -0.99999
    %v1025 = vmax.f32 %v1009, -0.99999
    %v1026 = vmax.f32 %v1010, -0.99999
    %v1027 = vmax.f32 %v1011, -0.99999
    %v1028 = vmax.f32 %v1012, -0.99999
    %v1029 = vmax.f32 %v1013, -0.99999
    %v1030 = vmax.f32 %v1014, -0.99999
    %v1031 = vmax.f32 %v1015, -0.99999
    %v1032 = vmax.f32 %v1016, -0.99999
    %v1033 = vmax.f32 %v1017, -0.99999
    %v1034 = vmin.f32 %v1018, 0.99999
    %v1035 = vmin.f32 %v1019, 0.99999
    %v1036 = vmin.f32 %v1020, 0.99999
    %v1037 = vmin.f32 %v1021, 0.99999
    %v1038 = vmin.f32 %v1022, 0.99999
    %v1039 = vmin.f32 %v1023, 0.99999
    %v1040 = vmin.f32 %v1024, 0.99999
    %v1041 = vmin.f32 %v1025, 0.99999
    %v1042 = vmin.f32 %v1026, 0.99999
    %v1043 = vmin.f32 %v1027, 0.99999
    %v1044 = vmin.f32 %v1028, 0.99999
    %v1045 = vmin.f32 %v1029, 0.99999
    %v1046 = vmin.f32 %v1030, 0.99999
    %v1047 = vmin.f32 %v1031, 0.99999
    %v1048 = vmin.f32 %v1032, 0.99999
    %v1049 = vmin.f32 %v1033, 0.99999
    %v1050 = vadd.f32 %v1034, 1.0
    %v1051 = vadd.f32 %v1035, 1.0
    %v1052 = vadd.f32 %v1036, 1.0
    %v1053 = vadd.f32 %v1037, 1.0
    %v1054 = vadd.f32 %v1038, 1.0
    %v1055 = vadd.f32 %v1039, 1.0
    %v1056 = vadd.f32 %v1040, 1.0
    %v1057 = vadd.f32 %v1041, 1.0
    %v1058 = vadd.f32 %v1042, 1.0
    %v1059 = vadd.f32 %v1043, 1.0
    %v1060 = vadd.f32 %v1044, 1.0
    %v1061 = vadd.f32 %v1045, 1.0
    %v1062 = vadd.f32 %v1046, 1.0
    %v1063 = vadd.f32 %v1047, 1.0
    %v1064 = vadd.f32 %v1048, 1.0
    %v1065 = vadd.f32 %v1049, 1.0
    %v1066 = vsub.f32 1.0, %v1034
    %v1067 = vsub.f32 1.0, %v1035
    %v1068 = vsub.f32 1.0, %v1036
    %v1069 = vsub.f32 1.0, %v1037
    %v1070 = vsub.f32 1.0, %v1038
    %v1071 = vsub.f32 1.0, %v1039
    %v1072 = vsub.f32 1.0, %v1040
    %v1073 = vsub.f32 1.0, %v1041
    %v1074 = vsub.f32 1.0, %v1042
    %v1075 = vsub.f32 1.0, %v1043
    %v1076 = vsub.f32 1.0, %v1044
    %v1077 = vsub.f32 1.0, %v1045
    %v1078 = vsub.f32 1.0, %v1046
    %v1079 = vsub.f32 1.0, %v1047
    %v1080 = vsub.f32 1.0, %v1048
    %v1081 = vsub.f32 1.0, %v1049
    %v1082 = vrcp.pop %v1066
    %v1083 = vmul.f32 %v1050, %v1082
    %v1084 = vrcp.pop %v1067
    %v1085 = vmul.f32 %v1051, %v1084
    %v1086 = vrcp.pop %v1068
    %v1087 = vmul.f32 %v1052, %v1086
    %v1088 = vrcp.pop %v1069
    %v1089 = vmul.f32 %v1053, %v1088
    %v1090 = vrcp.pop %v1070
    %v1091 = vmul.f32 %v1054, %v1090
    %v1092 = vrcp.pop %v1071
    %v1093 = vmul.f32 %v1055, %v1092
    %v1094 = vrcp.pop %v1072
    %v1095 = vmul.f32 %v1056, %v1094
    %v1096 = vrcp.pop %v1073
    %v1097 = vmul.f32 %v1057, %v1096
    %v1098 = vrcp.pop %v1074
    %v1099 = vmul.f32 %v1058, %v1098
    %v1100 = vrcp.pop %v1075
    %v1101 = vmul.f32 %v1059, %v1100
    %v1102 = vrcp.pop %v1076
    %v1103 = vmul.f32 %v1060, %v1102
    %v1104 = vrcp.pop %v1077
    %v1105 = vmul.f32 %v1061, %v1104
    %v1106 = vrcp.pop %v1078
    %v1107 = vmul.f32 %v1062, %v1106
    %v1108 = vrcp.pop %v1079
    %v1109 = vmul.f32 %v1063, %v1108
    %v1110 = vrcp.pop %v1080
    %v1111 = vmul.f32 %v1064, %v1110
    %v1112 = vrcp.pop %v1081
    %v1113 = vmul.f32 %v1065, %v1112
    %v1114 = vlog2.pop %v1083
    %v1115 = vmul.f32 %v1114, 0.6931472
    %v1116 = vlog2.pop %v1085
    %v1117 = vmul.f32 %v1116, 0.6931472
    %v1118 = vlog2.pop %v1087
    %v1119 = vmul.f32 %v1118, 0.6931472
    %v1120 = vlog2.pop %v1089
    %v1121 = vmul.f32 %v1120, 0.6931472
    %v1122 = vlog2.pop %v1091
    %v1123 = vmul.f32 %v1122, 0.6931472
    %v1124 = vlog2.pop %v1093
    %v1125 = vmul.f32 %v1124, 0.6931472
    %v1126 = vlog2.pop %v1095
    %v1127 = vmul.f32 %v1126, 0.6931472
    %v1128 = vlog2.pop %v1097
    %v1129 = vmul.f32 %v1128, 0.6931472
    %v1130 = vlog2.pop %v1099
    %v1131 = vmul.f32 %v1130, 0.6931472
    %v1132 = vlog2.pop %v1101
    %v1133 = vmul.f32 %v1132, 0.6931472
    %v1134 = vlog2.pop %v1103
    %v1135 = vmul.f32 %v1134, 0.6931472
    %v1136 = vlog2.pop %v1105
    %v1137 = vmul.f32 %v1136, 0.6931472
    %v1138 = vlog2.pop %v1107
    %v1139 = vmul.f32 %v1138, 0.6931472
    %v1140 = vlog2.pop %v1109
    %v1141 = vmul.f32 %v1140, 0.6931472
    %v1142 = vlog2.pop %v1111
    %v1143 = vmul.f32 %v1142, 0.6931472
    %v1144 = vlog2.pop %v1113
    %v1145 = vmul.f32 %v1144, 0.6931472
    %v1146 = vmul.f32 %v1115, 0.5
    %v1147 = vmul.f32 %v1117, 0.5
    %v1148 = vmul.f32 %v1119, 0.5
    %v1149 = vmul.f32 %v1121, 0.5
    %v1150 = vmul.f32 %v1123, 0.5
    %v1151 = vmul.f32 %v1125, 0.5
    %v1152 = vmul.f32 %v1127, 0.5
    %v1153 = vmul.f32 %v1129, 0.5
    %v1154 = vmul.f32 %v1131, 0.5
    %v1155 = vmul.f32 %v1133, 0.5
    %v1156 = vmul.f32 %v1135, 0.5
    %v1157 = vmul.f32 %v1137, 0.5
    %v1158 = vmul.f32 %v1139, 0.5
    %v1159 = vmul.f32 %v1141, 0.5
    %v1160 = vmul.f32 %v1143, 0.5
    %v1161 = vmul.f32 %v1145, 0.5
    %v1162 = vmul.f32 %v1146, 6.3245554
    %v1163 = vmul.f32 %v1147, 6.3245554
    %v1164 = vmul.f32 %v1148, 6.3245554
    %v1165 = vmul.f32 %v1149, 6.3245554
    %v1166 = vmul.f32 %v1150, 6.3245554
    %v1167 = vmul.f32 %v1151, 6.3245554
    %v1168 = vmul.f32 %v1152, 6.3245554
    %v1169 = vmul.f32 %v1153, 6.3245554
    %v1170 = vmul.f32 %v1154, 6.3245554
    %v1171 = vmul.f32 %v1155, 6.3245554
    %v1172 = vmul.f32 %v1156, 6.3245554
    %v1173 = vmul.f32 %v1157, 6.3245554
    %v1174 = vmul.f32 %v1158, 6.3245554
    %v1175 = vmul.f32 %v1159, 6.3245554
    %v1176 = vmul.f32 %v1160, 6.3245554
    %v1177 = vmul.f32 %v1161, 6.3245554
    %1178 = vst [vmem:[#allocation2] sm:$0xff] %v1162
    %1179 = vst [vmem:[#allocation2 + $0x8] sm:$0xff] %v1163
    %1180 = vst [vmem:[#allocation2 + $0x10] sm:$0xff] %v1164
    %1181 = vst [vmem:[#allocation2 + $0x18] sm:$0xff] %v1165
    %1182 = vst [vmem:[#allocation2 + $0x20] sm:$0xff] %v1166
    %1183 = vst [vmem:[#allocation2 + $0x28] sm:$0xff] %v1167
    %1184 = vst [vmem:[#allocation2 + $0x30] sm:$0xff] %v1168
    %1185 = vst [vmem:[#allocation2 + $0x38] sm:$0xff] %v1169
    %1186 = vst [vmem:[#allocation2 + $0x40] sm:$0xff] %v1170
    %1187 = vst [vmem:[#allocation2 + $0x48] sm:$0xff] %v1171
    %1188 = vst [vmem:[#allocation2 + $0x50] sm:$0xff] %v1172
    %1189 = vst [vmem:[#allocation2 + $0x58] sm:$0xff] %v1173
    %1190 = vst [vmem:[#allocation2 + $0x60] sm:$0xff] %v1174
    %1191 = vst [vmem:[#allocation2 + $0x68] sm:$0xff] %v1175
    %1192 = vst [vmem:[#allocation2 + $0x70] sm:$0xff] %v1176
    %1193 = vst [vmem:[#allocation2 + $0x78] sm:$0xff] %v1177
    %v1194 = vld [vmem:[%s4] sm:$0xff]
    %v1195 = vld [vmem:[%s4 + $0x8] sm:$0xff]
    %v1196 = vld [vmem:[%s4 + $0x10] sm:$0xff]
    %v1197 = vld [vmem:[%s4 + $0x18] sm:$0xff]
    %v1198 = vld [vmem:[%s4 + $0x20] sm:$0xff]
    %v1199 = vld [vmem:[%s4 + $0x28] sm:$0xff]
    %v1200 = vld [vmem:[%s4 + $0x30] sm:$0xff]
    %v1201 = vld [vmem:[%s4 + $0x38] sm:$0xff]
    %v1202 = vld [vmem:[%s4 + $0x40] sm:$0xff]
    %v1203 = vld [vmem:[%s4 + $0x48] sm:$0xff]
    %v1204 = vld [vmem:[%s4 + $0x50] sm:$0xff]
    %v1205 = vld [vmem:[%s4 + $0x58] sm:$0xff]
    %v1206 = vld [vmem:[%s4 + $0x60] sm:$0xff]
    %v1207 = vld [vmem:[%s4 + $0x68] sm:$0xff]
    %v1208 = vld [vmem:[%s4 + $0x70] sm:$0xff]
    %v1209 = vld [vmem:[%s4 + $0x78] sm:$0xff]
    %v1210 = vld [vmem:[%s5] sm:$0x1]
    %1211 = vset.pattern.permute.xlu0 0
    %1212 = vperm.xlu0 %1211, %v1194
    %v1213 = vpop.permute.xlu0 %1212
    %1214 = vset.pattern.permute.xlu0 0
    %1215 = vperm.xlu0 %1214, %v1195
    %v1216 = vpop.permute.xlu0 %1215
    %1217 = vset.pattern.permute.xlu0 0
    %1218 = vperm.xlu0 %1217, %v1196
    %v1219 = vpop.permute.xlu0 %1218
    %1220 = vset.pattern.permute.xlu0 0
    %1221 = vperm.xlu0 %1220, %v1197
    %v1222 = vpop.permute.xlu0 %1221
    %1223 = vset.pattern.permute.xlu0 0
    %1224 = vperm.xlu0 %1223, %v1198
    %v1225 = vpop.permute.xlu0 %1224
    %1226 = vset.pattern.permute.xlu0 0
    %1227 = vperm.xlu0 %1226, %v1199
    %v1228 = vpop.permute.xlu0 %1227
    %1229 = vset.pattern.permute.xlu0 0
    %1230 = vperm.xlu0 %1229, %v1200
    %v1231 = vpop.permute.xlu0 %1230
    %1232 = vset.pattern.permute.xlu0 0
    %1233 = vperm.xlu0 %1232, %v1201
    %v1234 = vpop.permute.xlu0 %1233
    %1235 = vset.pattern.permute.xlu0 0
    %1236 = vperm.xlu0 %1235, %v1202
    %v1237 = vpop.permute.xlu0 %1236
    %1238 = vset.pattern.permute.xlu0 0
    %1239 = vperm.xlu0 %1238, %v1203
    %v1240 = vpop.permute.xlu0 %1239
    %1241 = vset.pattern.permute.xlu0 0
    %1242 = vperm.xlu0 %1241, %v1204
    %v1243 = vpop.permute.xlu0 %1242
    %1244 = vset.pattern.permute.xlu0 0
    %1245 = vperm.xlu0 %1244, %v1205
    %v1246 = vpop.permute.xlu0 %1245
    %1247 = vset.pattern.permute.xlu0 0
    %1248 = vperm.xlu0 %1247, %v1206
    %v1249 = vpop.permute.xlu0 %1248
    %1250 = vset.pattern.permute.xlu0 0
    %1251 = vperm.xlu0 %1250, %v1207
    %v1252 = vpop.permute.xlu0 %1251
    %1253 = vset.pattern.permute.xlu0 0
    %1254 = vperm.xlu0 %1253, %v1208
    %v1255 = vpop.permute.xlu0 %1254
    %1256 = vset.pattern.permute.xlu0 0
    %1257 = vperm.xlu0 %1256, %v1209
    %v1258 = vpop.permute.xlu0 %1257
    %v1259 = vlaneseq
    %v1260 = vshrl.u32 %v1259, 7
    %v1261 = vsub.s32 0, %v1260
    %v1262 = vrot.slane %v1210, %v1261
    %vm1263 = vcmp.eq.s32.totalorder %v1213, %v1262
    %vm1264 = vcmp.eq.s32.totalorder %v1216, %v1262
    %vm1265 = vcmp.eq.s32.totalorder %v1219, %v1262
    %vm1266 = vcmp.eq.s32.totalorder %v1222, %v1262
    %vm1267 = vcmp.eq.s32.totalorder %v1225, %v1262
    %vm1268 = vcmp.eq.s32.totalorder %v1228, %v1262
    %vm1269 = vcmp.eq.s32.totalorder %v1231, %v1262
    %vm1270 = vcmp.eq.s32.totalorder %v1234, %v1262
    %vm1271 = vcmp.eq.s32.totalorder %v1237, %v1262
    %vm1272 = vcmp.eq.s32.totalorder %v1240, %v1262
    %vm1273 = vcmp.eq.s32.totalorder %v1243, %v1262
    %vm1274 = vcmp.eq.s32.totalorder %v1246, %v1262
    %vm1275 = vcmp.eq.s32.totalorder %v1249, %v1262
    %vm1276 = vcmp.eq.s32.totalorder %v1252, %v1262
    %vm1277 = vcmp.eq.s32.totalorder %v1255, %v1262
    %vm1278 = vcmp.eq.s32.totalorder %v1258, %v1262
    %v1279 = vsel %vm1263, 1, 0
    %v1280 = vsel %vm1264, 1, 0
    %v1281 = vsel %vm1265, 1, 0
    %v1282 = vsel %vm1266, 1, 0
    %v1283 = vsel %vm1267, 1, 0
    %v1284 = vsel %vm1268, 1, 0
    %v1285 = vsel %vm1269, 1, 0
    %v1286 = vsel %vm1270, 1, 0
    %v1287 = vsel %vm1271, 1, 0
    %v1288 = vsel %vm1272, 1, 0
    %v1289 = vsel %vm1273, 1, 0
    %v1290 = vsel %vm1274, 1, 0
    %v1291 = vsel %vm1275, 1, 0
    %v1292 = vsel %vm1276, 1, 0
    %v1293 = vsel %vm1277, 1, 0
    %v1294 = vsel %vm1278, 1, 0
    %v1295 = vcvt.s32.f32 %v1279
    %v1296 = vcvt.s32.f32 %v1280
    %v1297 = vcvt.s32.f32 %v1281
    %v1298 = vcvt.s32.f32 %v1282
    %v1299 = vcvt.s32.f32 %v1283
    %v1300 = vcvt.s32.f32 %v1284
    %v1301 = vcvt.s32.f32 %v1285
    %v1302 = vcvt.s32.f32 %v1286
    %v1303 = vcvt.s32.f32 %v1287
    %v1304 = vcvt.s32.f32 %v1288
    %v1305 = vcvt.s32.f32 %v1289
    %v1306 = vcvt.s32.f32 %v1290
    %v1307 = vcvt.s32.f32 %v1291
    %v1308 = vcvt.s32.f32 %v1292
    %v1309 = vcvt.s32.f32 %v1293
    %v1310 = vcvt.s32.f32 %v1294
    %v1311 = vsub.f32 0.0, %v1162
    %v1312 = vsub.f32 0.0, %v1163
    %v1313 = vsub.f32 0.0, %v1164
    %v1314 = vsub.f32 0.0, %v1165
    %v1315 = vsub.f32 0.0, %v1166
    %v1316 = vsub.f32 0.0, %v1167
    %v1317 = vsub.f32 0.0, %v1168
    %v1318 = vsub.f32 0.0, %v1169
    %v1319 = vsub.f32 0.0, %v1170
    %v1320 = vsub.f32 0.0, %v1171
    %v1321 = vsub.f32 0.0, %v1172
    %v1322 = vsub.f32 0.0, %v1173
    %v1323 = vsub.f32 0.0, %v1174
    %v1324 = vsub.f32 0.0, %v1175
    %v1325 = vsub.f32 0.0, %v1176
    %v1326 = vsub.f32 0.0, %v1177
    %v1327 = vmul.f32 %v1311, 1.442695
    %v1328 = vpow.pop %v1327
    %v1329 = vmul.f32 %v1312, 1.442695
    %v1330 = vpow.pop %v1329
    %v1331 = vmul.f32 %v1313, 1.442695
    %v1332 = vpow.pop %v1331
    %v1333 = vmul.f32 %v1314, 1.442695
    %v1334 = vpow.pop %v1333
    %v1335 = vmul.f32 %v1315, 1.442695
    %v1336 = vpow.pop %v1335
    %v1337 = vmul.f32 %v1316, 1.442695
    %v1338 = vpow.pop %v1337
    %v1339 = vmul.f32 %v1317, 1.442695
    %v1340 = vpow.pop %v1339
    %v1341 = vmul.f32 %v1318, 1.442695
    %v1342 = vpow.pop %v1341
    %v1343 = vmul.f32 %v1319, 1.442695
    %v1344 = vpow.pop %v1343
    %v1345 = vmul.f32 %v1320, 1.442695
    %v1346 = vpow.pop %v1345
    %v1347 = vmul.f32 %v1321, 1.442695
    %v1348 = vpow.pop %v1347
    %v1349 = vmul.f32 %v1322, 1.442695
    %v1350 = vpow.pop %v1349
    %v1351 = vmul.f32 %v1323, 1.442695
    %v1352 = vpow.pop %v1351
    %v1353 = vmul.f32 %v1324, 1.442695
    %v1354 = vpow.pop %v1353
    %v1355 = vmul.f32 %v1325, 1.442695
    %v1356 = vpow.pop %v1355
    %v1357 = vmul.f32 %v1326, 1.442695
    %v1358 = vpow.pop %v1357
    %v1359 = vadd.f32 %v1328, %v1295
    %v1360 = vadd.f32 %v1330, %v1296
    %v1361 = vadd.f32 %v1332, %v1297
    %v1362 = vadd.f32 %v1334, %v1298
    %v1363 = vadd.f32 %v1336, %v1299
    %v1364 = vadd.f32 %v1338, %v1300
    %v1365 = vadd.f32 %v1340, %v1301
    %v1366 = vadd.f32 %v1342, %v1302
    %v1367 = vadd.f32 %v1344, %v1303
    %v1368 = vadd.f32 %v1346, %v1304
    %v1369 = vadd.f32 %v1348, %v1305
    %v1370 = vadd.f32 %v1350, %v1306
    %v1371 = vadd.f32 %v1352, %v1307
    %v1372 = vadd.f32 %v1354, %v1308
    %v1373 = vadd.f32 %v1356, %v1309
    %v1374 = vadd.f32 %v1358, %v1310
    %1375 = vst [vmem:[#allocation4] sm:$0xff] %v1359
    %1376 = vst [vmem:[#allocation4 + $0x8] sm:$0xff] %v1360
    %1377 = vst [vmem:[#allocation4 + $0x10] sm:$0xff] %v1361
    %1378 = vst [vmem:[#allocation4 + $0x18] sm:$0xff] %v1362
    %1379 = vst [vmem:[#allocation4 + $0x20] sm:$0xff] %v1363
    %1380 = vst [vmem:[#allocation4 + $0x28] sm:$0xff] %v1364
    %1381 = vst [vmem:[#allocation4 + $0x30] sm:$0xff] %v1365
    %1382 = vst [vmem:[#allocation4 + $0x38] sm:$0xff] %v1366
    %1383 = vst [vmem:[#allocation4 + $0x40] sm:$0xff] %v1367
    %1384 = vst [vmem:[#allocation4 + $0x48] sm:$0xff] %v1368
    %1385 = vst [vmem:[#allocation4 + $0x50] sm:$0xff] %v1369
    %1386 = vst [vmem:[#allocation4 + $0x58] sm:$0xff] %v1370
    %1387 = vst [vmem:[#allocation4 + $0x60] sm:$0xff] %v1371
    %1388 = vst [vmem:[#allocation4 + $0x68] sm:$0xff] %v1372
    %1389 = vst [vmem:[#allocation4 + $0x70] sm:$0xff] %v1373
    %1390 = vst [vmem:[#allocation4 + $0x78] sm:$0xff] %v1374
    // Predicated region
    $region26: #{tpu_custom_call.1} parent=1 // pred_check
      _
    $region27: #{tpu_custom_call.1} parent=1 // pred_check_branch
      %1392 = sbr.rel (0) target = $region29
    $region28: #{tpu_custom_call.1} parent=1 // pred_region
      %s1394 = ssub.s32 2048, 2048
      %1395 = vsyncadd [#allocation3], %s1394
      %s1396 = sshll.u32 [#allocation2], 4
      %s1397 = int_to_ptr.vmem [resolvable:$true] %s1396
      %1402 = dma.vmem_to_hbm [thread:$0]  %s1397, 2048, %s6, [#allocation3], 128, 128, 8
    $region29: #{tpu_custom_call.1} parent=1 // pred_fallthru
      _
    // Predicated region
    $region30: #{tpu_custom_call.1} parent=1 // pred_check
      _
    $region31: #{tpu_custom_call.1} parent=1 // pred_check_branch
      %1404 = sbr.rel (0) target = $region33
    $region32: #{tpu_custom_call.1} parent=1 // pred_region
      %s1406 = ssub.s32 2048, 2048
      %1407 = vsyncadd [#allocation5], %s1406
      %s1408 = sshll.u32 [#allocation4], 4
      %s1409 = int_to_ptr.vmem [resolvable:$true] %s1408
      %1414 = dma.vmem_to_hbm [thread:$0]  %s1409, 2048, %s7, [#allocation5], 128, 128, 8
    $region33: #{tpu_custom_call.1} parent=1 // pred_fallthru
      _
    // Predicated region
    $region34: #{tpu_custom_call.1} parent=1 // pred_check
      _
    $region35: #{tpu_custom_call.1} parent=1 // pred_check_branch
      %1416 = sbr.rel (0) target = $region37
    $region36: #{tpu_custom_call.1} parent=1 // pred_region
      %1417 = dma.done [#allocation3], 2048
    $region37: #{tpu_custom_call.1} parent=1 // pred_fallthru
      _
    // Predicated region
    $region38: #{tpu_custom_call.1} parent=1 // pred_check
      _
    $region39: #{tpu_custom_call.1} parent=1 // pred_check_branch
      %1419 = sbr.rel (0) target = $region41
    $region40: #{tpu_custom_call.1} parent=1 // pred_region
      %1420 = dma.done [#allocation5], 2048
    $region41: #{tpu_custom_call.1} parent=1 // pred_fallthru
      _
    %1421 = vsyncpa [#allocation3], 1
    %1422 = vsyncpa [#allocation5], 1

</llo_original>
